<compile_context>
chip_gen: v6e
topology: v6e:2x2x1
jax: 0.10.0
libtpu: 0.0.40
codegen_flags: <defaults>
</compile_context>

<pallas_src>
import functools

import jax
import jax.numpy as jnp
import numpy as np
from jax.experimental import pallas as pl
from jax.experimental.pallas import tpu as pltpu


# ----------------------------------------------------------------------------
# Fused Pallas kernel: Conv2d(k=3,s=1,p=1)+bias+ReLU -> flatten -> Linear+bias.
# One grid step per batch element; the conv activation stays on-chip.
# ----------------------------------------------------------------------------
def _fused_conv_fc_kernel(xp_ref, tconv_ref, bconv_ref, wfc_ref, bfc_ref,
                          o_ref, act_ref, *, k, ho):
    # xp_ref block: (1, H+2, (W+2)*C) -- spatially padded NHWC input with W
    # and C folded into the lane dim so each 3-row band feeds one matmul.
    # Conv as k banded matmuls: tconv_ref[i] is ((W+2)*C, W*O) and already
    # encodes the kw/C structure, so the result tile is lane-dense (W*O = 128)
    # with columns ordered (w, o) == HWC-flatten chunks per output row h.
    acc = jnp.dot(xp_ref[0, 0:ho, :], tconv_ref[0],
                  preferred_element_type=jnp.float32)
    for i in range(1, k):
        acc = acc + jnp.dot(xp_ref[0, i:i + ho, :], tconv_ref[i],
                            preferred_element_type=jnp.float32)
    # Single VPU bias add + ReLU on the full (16, 128) tile, then stage in
    # VMEM so the fc loop below streams rows through the vector-load slots.
    act_ref[...] = jnp.maximum(acc + bconv_ref[...], 0.0)   # (16, 128)

    # Fully connected layer: wfc_ref is pre-permuted to (h, w*O+o, n) order and
    # zero-padded to 128 output lanes, so the 2048-long contraction is ho
    # accumulated row-matmuls over the lane-dense activation.
    y = bfc_ref[...]                                         # (1, 128), padded
    for h in range(ho):
        y = y + jnp.dot(act_ref[h:h + 1, :], wfc_ref[h],
                        preferred_element_type=jnp.float32)
    o_ref[...] = y.reshape(o_ref.shape)


def fused_conv_fc(xp2, t_conv, b_conv_row, w_fc_r, b_fc_row, *, k, ho, lanes):
    """xp2: (B, H+2, (W+2)*C) padded NHWC input with (W,C) folded into lanes."""
    B, hp, wc = xp2.shape
    flops = 2 * B * (k * ho * wc * lanes + ho * lanes * lanes)
    bytes_accessed = 4 * (xp2.size + t_conv.size + b_conv_row.size
                          + w_fc_r.size + b_fc_row.size + B * lanes)
    return pl.pallas_call(
        functools.partial(_fused_conv_fc_kernel, k=k, ho=ho),
        out_shape=jax.ShapeDtypeStruct((B, 1, lanes), jnp.float32),
        grid_spec=pltpu.PrefetchScalarGridSpec(
            num_scalar_prefetch=0,
            grid=(B,),
            in_specs=[
                pl.BlockSpec((1, hp, wc), lambda b: (b, 0, 0)),       # input
                pl.BlockSpec(t_conv.shape, lambda b: (0, 0, 0)),      # conv W
                pl.BlockSpec(b_conv_row.shape, lambda b: (0, 0)),     # conv b
                pl.BlockSpec(w_fc_r.shape, lambda b: (0, 0, 0)),      # fc W
                pl.BlockSpec(b_fc_row.shape, lambda b: (0, 0)),       # fc b
            ],
            out_specs=pl.BlockSpec((1, 1, lanes), lambda b: (b, 0, 0)),
            scratch_shapes=[pltpu.VMEM((ho, lanes), jnp.float32)],
        ),
        compiler_params=pltpu.CompilerParams(
            dimension_semantics=("parallel",)),
        cost_estimate=pl.CostEstimate(flops=flops, transcendentals=0,
                                      bytes_accessed=bytes_accessed),
    )(xp2, t_conv, b_conv_row, w_fc_r, b_fc_row)


# ----------------------------------------------------------------------------
# Init-time weight layout (hoisted out of the forward path).
# ----------------------------------------------------------------------------
def _build_conv_band_weights(conv_w, conv_b, W):
    """Fold the (O,C,kh,kw) conv weight into kh banded matrices of shape
    ((W+2)*C, W*O) so conv = sum_i band_i(x) @ T_i with lane-dense output."""
    O, C, k, _ = conv_w.shape
    w_np = np.asarray(conv_w, np.float32)
    T = np.zeros((k, (W + 2) * C, W * O), np.float32)
    for i in range(k):
        for j in range(k):
            wij = w_np[:, :, i, j].T                    # (C, O)
            for w in range(W):
                T[i, (w + j) * C:(w + j + 1) * C, w * O:(w + 1) * O] = wij
    b_row = np.tile(np.asarray(conv_b, np.float32), W).reshape(1, W * O)
    return jnp.asarray(T), jnp.asarray(b_row)


def _build_fc_weights(fc_w, fc_b, O, H, W, lanes):
    """Permute fc weight rows from CHW-flatten order (PyTorch .reshape(B,-1)
    on NCHW) to the kernel's (h, w*O+o) activation layout, zero-padding the
    output features up to a lane-dense width."""
    N = fc_w.shape[0]
    w_np = np.asarray(fc_w, np.float32).reshape(N, O, H, W)
    w_np = np.transpose(w_np, (2, 3, 1, 0)).reshape(H, W * O, N)
    w_pad = np.zeros((H, W * O, lanes), np.float32)
    w_pad[:, :, :N] = w_np
    b_pad = np.zeros((1, lanes), np.float32)
    b_pad[0, :N] = np.asarray(fc_b, np.float32)
    return jnp.asarray(w_pad), jnp.asarray(b_pad)


def _fused_forward(x, t_conv, b_conv_row, w_fc_r, b_fc_row, *,
                   k, ho, width, in_channels, lanes, fc_out):
    # x: NCHW (B, C, H, W) float32.  One transpose+pad+flatten of the tiny raw
    # input; the 9x im2col expansion lives in the banded weights in-kernel.
    B = x.shape[0]
    pad = (k - 1) // 2
    xp = jnp.pad(jnp.transpose(x, (0, 2, 3, 1)),
                 ((0, 0), (pad, pad), (pad, pad), (0, 0)))
    xp2 = xp.reshape(B, ho + 2 * pad, (width + 2 * pad) * in_channels)
    out = fused_conv_fc(xp2, t_conv, b_conv_row, w_fc_r, b_fc_row,
                        k=k, ho=ho, lanes=lanes)
    return out[:, 0, :fc_out]


# ----------------------------------------------------------------------------
# Concrete Model (the base class's forward is abstract; MAC tracking mirrored).
# ----------------------------------------------------------------------------
class PallasModel:
    LANES = 128  # lane-dense width of the conv activation / fc output

    def __init__(self, key, *, in_channels=4, conv_out=8, k=3,
                 height=16, width=16, fc_out=32):
        assert width * conv_out == self.LANES, "fused layout assumes W*O == 128"
        self.MAC_ops = {}
        self.track_MACs = True
        self.in_channels, self.conv_out, self.k = in_channels, conv_out, k
        self.height, self.width, self.fc_out = height, width, fc_out
        self.fc_in = conv_out * height * width

        kw1, kb1, kw2, kb2 = jax.random.split(key, 4)
        cb = 1.0 / float(np.sqrt(in_channels * k * k))
        self.conv_weight = jax.random.uniform(
            kw1, (conv_out, in_channels, k, k), jnp.float32, -cb, cb)
        self.conv_bias = jax.random.uniform(
            kb1, (conv_out,), jnp.float32, -cb, cb)
        fb = 1.0 / float(np.sqrt(self.fc_in))
        self.fc_weight = jax.random.uniform(
            kw2, (fc_out, self.fc_in), jnp.float32, -fb, fb)
        self.fc_bias = jax.random.uniform(
            kb2, (fc_out,), jnp.float32, -fb, fb)

        # Kernel-layout parameters: built once here, never in forward.
        self._t_conv, self._b_conv_row = _build_conv_band_weights(
            self.conv_weight, self.conv_bias, width)
        self._w_fc_r, self._b_fc_row = _build_fc_weights(
            self.fc_weight, self.fc_bias, conv_out, height, width, self.LANES)

        self._fwd = jax.jit(functools.partial(
            _fused_forward, k=k, ho=height, width=width,
            in_channels=in_channels, lanes=self.LANES, fc_out=fc_out))

        # Per-sample MAC counts (constant), accumulated per forward call.
        self._conv_macs_per_sample = (
            height * width * conv_out * (in_channels * k * k))
        self._fc_macs_per_sample = self.fc_in * fc_out

    # --- mirrors Model.layer_hook / set_ / unset_ / get_MACs -----------------
    def _record_macs(self, name, macs):
        if self.track_MACs:
            self.MAC_ops[name] = self.MAC_ops.get(name, 0) + macs

    def set_track_MACs(self):
        self.track_MACs = True

    def unset_track_MACs(self):
        self.track_MACs = False

    def get_MACs(self):
        return self.MAC_ops

    def forward(self, x):
        # x: [B, C, H, W] NCHW float32
        B = x.shape[0]
        y = self._fwd(x, self._t_conv, self._b_conv_row,
                      self._w_fc_r, self._b_fc_row)
        self._record_macs("conv1", B * self._conv_macs_per_sample)
        self._record_macs("fc", B * self._fc_macs_per_sample)
        return y


if __name__ == "__main__":
    key = jax.random.PRNGKey(0)
    k_model, k_input = jax.random.split(key)

    x = jax.random.normal(k_input, (2, 4, 16, 16), jnp.float32)  # NCHW
    model = PallasModel(k_model)

    y = model.forward(x)
    y = jax.block_until_ready(y)
    assert y.shape == (2, 32), y.shape

    # Pure-XLA reference forward to validate the fused kernel numerically.
    ref = jax.lax.conv_general_dilated(
        x, model.conv_weight, window_strides=(1, 1),
        padding=((1, 1), (1, 1)),
        dimension_numbers=("NCHW", "OIHW", "NCHW"),
        precision=jax.lax.Precision.HIGHEST)
    ref = jnp.maximum(ref + model.conv_bias[None, :, None, None], 0.0)
    ref = ref.reshape(x.shape[0], -1)
    ref = jnp.dot(ref, model.fc_weight.T,
                  precision=jax.lax.Precision.HIGHEST) + model.fc_bias
    np.testing.assert_allclose(np.asarray(y), np.asarray(ref),
                               rtol=1e-3, atol=1e-3)

    assert model.get_MACs()["conv1"] == 2 * 16 * 16 * 8 * (4 * 3 * 3)
    assert model.get_MACs()["fc"] == 2 * (8 * 16 * 16) * 32
    print("KERNEL_OK")
</pallas_src>

<mosaic_0001>
module attributes {stable_mosaic.version = 11 : i64} {
  func.func @_fused_conv_fc_kernel(%arg0: i32, %arg1: memref<1x18x72xf32, #tpu.memory_space<vmem>>, %arg2: memref<3x72x128xf32, #tpu.memory_space<vmem>>, %arg3: memref<1x128xf32, #tpu.memory_space<vmem>>, %arg4: memref<16x128x128xf32, #tpu.memory_space<vmem>>, %arg5: memref<1x128xf32, #tpu.memory_space<vmem>>, %arg6: memref<1x1x128xf32, #tpu.memory_space<vmem>>, %arg7: memref<16x128xf32, #tpu.memory_space<vmem>>) attributes {dimension_semantics = [#tpu.dimension_semantics<parallel>], iteration_bounds = array<i64: 2>, scalar_prefetch = 0 : i64, scratch_operands = 1 : i64, tpu.core_type = #tpu.core_type<tc>, window_params = [{transform_indices = @transform_0, window_bounds = array<i64: 1, 18, 72>}, {pipeline_mode = #tpu.pipeline_mode<synchronous>, transform_indices = @transform_1, window_bounds = array<i64: 3, 72, 128>}, {pipeline_mode = #tpu.pipeline_mode<synchronous>, transform_indices = @transform_2, window_bounds = array<i64: 1, 128>}, {pipeline_mode = #tpu.pipeline_mode<synchronous>, transform_indices = @transform_3, window_bounds = array<i64: 16, 128, 128>}, {pipeline_mode = #tpu.pipeline_mode<synchronous>, transform_indices = @transform_4, window_bounds = array<i64: 1, 128>}, {transform_indices = @transform_5, window_bounds = array<i64: 1, 1, 128>}]} {
    %c0 = arith.constant 0 : index
    %c0_0 = arith.constant 0 : index
    %c0_1 = arith.constant 0 : index
    %0 = vector.load %arg1[%c0, %c0_0, %c0_1] : memref<1x18x72xf32, #tpu.memory_space<vmem>>, vector<1x16x72xf32>
    %1 = vector.shape_cast %0 : vector<1x16x72xf32> to vector<16x72xf32>
    %c0_2 = arith.constant 0 : index
    %c0_3 = arith.constant 0 : index
    %c0_4 = arith.constant 0 : index
    %2 = vector.load %arg2[%c0_2, %c0_3, %c0_4] : memref<3x72x128xf32, #tpu.memory_space<vmem>>, vector<1x72x128xf32>
    %3 = vector.shape_cast %2 : vector<1x72x128xf32> to vector<72x128xf32>
    %cst = arith.constant dense<0.000000e+00> : vector<16x128xf32>
    %4 = tpu.matmul %1, %3, %cst {dimension_numbers = #tpu.dot_dimension_numbers<[1], [0], [0], [1], [0, 0, 1, 1], [], []>} : vector<16x72xf32>, vector<72x128xf32>, vector<16x128xf32> -> vector<16x128xf32>
    %c0_5 = arith.constant 0 : index
    %c1 = arith.constant 1 : index
    %c0_6 = arith.constant 0 : index
    %5 = vector.load %arg1[%c0_5, %c1, %c0_6] : memref<1x18x72xf32, #tpu.memory_space<vmem>>, vector<1x16x72xf32>
    %6 = vector.shape_cast %5 : vector<1x16x72xf32> to vector<16x72xf32>
    %c1_7 = arith.constant 1 : index
    %c0_8 = arith.constant 0 : index
    %c0_9 = arith.constant 0 : index
    %7 = vector.load %arg2[%c1_7, %c0_8, %c0_9] : memref<3x72x128xf32, #tpu.memory_space<vmem>>, vector<1x72x128xf32>
    %8 = vector.shape_cast %7 : vector<1x72x128xf32> to vector<72x128xf32>
    %cst_10 = arith.constant dense<0.000000e+00> : vector<16x128xf32>
    %9 = tpu.matmul %6, %8, %cst_10 {dimension_numbers = #tpu.dot_dimension_numbers<[1], [0], [0], [1], [0, 0, 1, 1], [], []>} : vector<16x72xf32>, vector<72x128xf32>, vector<16x128xf32> -> vector<16x128xf32>
    %10 = arith.addf %4, %9 : vector<16x128xf32>
    %c0_11 = arith.constant 0 : index
    %c2 = arith.constant 2 : index
    %c0_12 = arith.constant 0 : index
    %11 = vector.load %arg1[%c0_11, %c2, %c0_12] : memref<1x18x72xf32, #tpu.memory_space<vmem>>, vector<1x16x72xf32>
    %12 = vector.shape_cast %11 : vector<1x16x72xf32> to vector<16x72xf32>
    %c2_13 = arith.constant 2 : index
    %c0_14 = arith.constant 0 : index
    %c0_15 = arith.constant 0 : index
    %13 = vector.load %arg2[%c2_13, %c0_14, %c0_15] : memref<3x72x128xf32, #tpu.memory_space<vmem>>, vector<1x72x128xf32>
    %14 = vector.shape_cast %13 : vector<1x72x128xf32> to vector<72x128xf32>
    %cst_16 = arith.constant dense<0.000000e+00> : vector<16x128xf32>
    %15 = tpu.matmul %12, %14, %cst_16 {dimension_numbers = #tpu.dot_dimension_numbers<[1], [0], [0], [1], [0, 0, 1, 1], [], []>} : vector<16x72xf32>, vector<72x128xf32>, vector<16x128xf32> -> vector<16x128xf32>
    %16 = arith.addf %10, %15 : vector<16x128xf32>
    %c0_17 = arith.constant 0 : index
    %c0_18 = arith.constant 0 : index
    %17 = vector.load %arg3[%c0_17, %c0_18] : memref<1x128xf32, #tpu.memory_space<vmem>>, vector<1x128xf32>
    %18 = vector.broadcast %17 : vector<1x128xf32> to vector<16x128xf32>
    %19 = arith.addf %16, %18 : vector<16x128xf32>
    %cst_19 = arith.constant 0.000000e+00 : f32
    %20 = vector.broadcast %cst_19 : f32 to vector<16x128xf32>
    %21 = arith.maximumf %19, %20 : vector<16x128xf32>
    %c0_20 = arith.constant 0 : index
    %c0_21 = arith.constant 0 : index
    %22 = vector.load %arg7[%c0_20, %c0_21] : memref<16x128xf32, #tpu.memory_space<vmem>>, vector<16x128xf32>
    tpu.vector_store %arg7[%c0_20, %c0_21], %21 {strides = array<i32>} : memref<16x128xf32, #tpu.memory_space<vmem>>, vector<16x128xf32>,
    %c0_22 = arith.constant 0 : index
    %c0_23 = arith.constant 0 : index
    %23 = vector.load %arg5[%c0_22, %c0_23] : memref<1x128xf32, #tpu.memory_space<vmem>>, vector<1x128xf32>
    %c0_24 = arith.constant 0 : index
    %c0_25 = arith.constant 0 : index
    %24 = vector.load %arg7[%c0_24, %c0_25] : memref<16x128xf32, #tpu.memory_space<vmem>>, vector<1x128xf32>
    %c0_26 = arith.constant 0 : index
    %c0_27 = arith.constant 0 : index
    %c0_28 = arith.constant 0 : index
    %25 = vector.load %arg4[%c0_26, %c0_27, %c0_28] : memref<16x128x128xf32, #tpu.memory_space<vmem>>, vector<1x128x128xf32>
    %26 = vector.shape_cast %25 : vector<1x128x128xf32> to vector<128x128xf32>
    %cst_29 = arith.constant dense<0.000000e+00> : vector<1x128xf32>
    %27 = tpu.matmul %24, %26, %cst_29 {dimension_numbers = #tpu.dot_dimension_numbers<[1], [0], [0], [1], [0, 0, 1, 1], [], []>} : vector<1x128xf32>, vector<128x128xf32>, vector<1x128xf32> -> vector<1x128xf32>
    %28 = arith.addf %23, %27 : vector<1x128xf32>
    %c1_30 = arith.constant 1 : index
    %c0_31 = arith.constant 0 : index
    %29 = vector.load %arg7[%c1_30, %c0_31] : memref<16x128xf32, #tpu.memory_space<vmem>>, vector<1x128xf32>
    %c1_32 = arith.constant 1 : index
    %c0_33 = arith.constant 0 : index
    %c0_34 = arith.constant 0 : index
    %30 = vector.load %arg4[%c1_32, %c0_33, %c0_34] : memref<16x128x128xf32, #tpu.memory_space<vmem>>, vector<1x128x128xf32>
    %31 = vector.shape_cast %30 : vector<1x128x128xf32> to vector<128x128xf32>
    %cst_35 = arith.constant dense<0.000000e+00> : vector<1x128xf32>
    %32 = tpu.matmul %29, %31, %cst_35 {dimension_numbers = #tpu.dot_dimension_numbers<[1], [0], [0], [1], [0, 0, 1, 1], [], []>} : vector<1x128xf32>, vector<128x128xf32>, vector<1x128xf32> -> vector<1x128xf32>
    %33 = arith.addf %28, %32 : vector<1x128xf32>
    %c2_36 = arith.constant 2 : index
    %c0_37 = arith.constant 0 : index
    %34 = vector.load %arg7[%c2_36, %c0_37] : memref<16x128xf32, #tpu.memory_space<vmem>>, vector<1x128xf32>
    %c2_38 = arith.constant 2 : index
    %c0_39 = arith.constant 0 : index
    %c0_40 = arith.constant 0 : index
    %35 = vector.load %arg4[%c2_38, %c0_39, %c0_40] : memref<16x128x128xf32, #tpu.memory_space<vmem>>, vector<1x128x128xf32>
    %36 = vector.shape_cast %35 : vector<1x128x128xf32> to vector<128x128xf32>
    %cst_41 = arith.constant dense<0.000000e+00> : vector<1x128xf32>
    %37 = tpu.matmul %34, %36, %cst_41 {dimension_numbers = #tpu.dot_dimension_numbers<[1], [0], [0], [1], [0, 0, 1, 1], [], []>} : vector<1x128xf32>, vector<128x128xf32>, vector<1x128xf32> -> vector<1x128xf32>
    %38 = arith.addf %33, %37 : vector<1x128xf32>
    %c3 = arith.constant 3 : index
    %c0_42 = arith.constant 0 : index
    %39 = vector.load %arg7[%c3, %c0_42] : memref<16x128xf32, #tpu.memory_space<vmem>>, vector<1x128xf32>
    %c3_43 = arith.constant 3 : index
    %c0_44 = arith.constant 0 : index
    %c0_45 = arith.constant 0 : index
    %40 = vector.load %arg4[%c3_43, %c0_44, %c0_45] : memref<16x128x128xf32, #tpu.memory_space<vmem>>, vector<1x128x128xf32>
    %41 = vector.shape_cast %40 : vector<1x128x128xf32> to vector<128x128xf32>
    %cst_46 = arith.constant dense<0.000000e+00> : vector<1x128xf32>
    %42 = tpu.matmul %39, %41, %cst_46 {dimension_numbers = #tpu.dot_dimension_numbers<[1], [0], [0], [1], [0, 0, 1, 1], [], []>} : vector<1x128xf32>, vector<128x128xf32>, vector<1x128xf32> -> vector<1x128xf32>
    %43 = arith.addf %38, %42 : vector<1x128xf32>
    %c4 = arith.constant 4 : index
    %c0_47 = arith.constant 0 : index
    %44 = vector.load %arg7[%c4, %c0_47] : memref<16x128xf32, #tpu.memory_space<vmem>>, vector<1x128xf32>
    %c4_48 = arith.constant 4 : index
    %c0_49 = arith.constant 0 : index
    %c0_50 = arith.constant 0 : index
    %45 = vector.load %arg4[%c4_48, %c0_49, %c0_50] : memref<16x128x128xf32, #tpu.memory_space<vmem>>, vector<1x128x128xf32>
    %46 = vector.shape_cast %45 : vector<1x128x128xf32> to vector<128x128xf32>
    %cst_51 = arith.constant dense<0.000000e+00> : vector<1x128xf32>
    %47 = tpu.matmul %44, %46, %cst_51 {dimension_numbers = #tpu.dot_dimension_numbers<[1], [0], [0], [1], [0, 0, 1, 1], [], []>} : vector<1x128xf32>, vector<128x128xf32>, vector<1x128xf32> -> vector<1x128xf32>
    %48 = arith.addf %43, %47 : vector<1x128xf32>
    %c5 = arith.constant 5 : index
    %c0_52 = arith.constant 0 : index
    %49 = vector.load %arg7[%c5, %c0_52] : memref<16x128xf32, #tpu.memory_space<vmem>>, vector<1x128xf32>
    %c5_53 = arith.constant 5 : index
    %c0_54 = arith.constant 0 : index
    %c0_55 = arith.constant 0 : index
    %50 = vector.load %arg4[%c5_53, %c0_54, %c0_55] : memref<16x128x128xf32, #tpu.memory_space<vmem>>, vector<1x128x128xf32>
    %51 = vector.shape_cast %50 : vector<1x128x128xf32> to vector<128x128xf32>
    %cst_56 = arith.constant dense<0.000000e+00> : vector<1x128xf32>
    %52 = tpu.matmul %49, %51, %cst_56 {dimension_numbers = #tpu.dot_dimension_numbers<[1], [0], [0], [1], [0, 0, 1, 1], [], []>} : vector<1x128xf32>, vector<128x128xf32>, vector<1x128xf32> -> vector<1x128xf32>
    %53 = arith.addf %48, %52 : vector<1x128xf32>
    %c6 = arith.constant 6 : index
    %c0_57 = arith.constant 0 : index
    %54 = vector.load %arg7[%c6, %c0_57] : memref<16x128xf32, #tpu.memory_space<vmem>>, vector<1x128xf32>
    %c6_58 = arith.constant 6 : index
    %c0_59 = arith.constant 0 : index
    %c0_60 = arith.constant 0 : index
    %55 = vector.load %arg4[%c6_58, %c0_59, %c0_60] : memref<16x128x128xf32, #tpu.memory_space<vmem>>, vector<1x128x128xf32>
    %56 = vector.shape_cast %55 : vector<1x128x128xf32> to vector<128x128xf32>
    %cst_61 = arith.constant dense<0.000000e+00> : vector<1x128xf32>
    %57 = tpu.matmul %54, %56, %cst_61 {dimension_numbers = #tpu.dot_dimension_numbers<[1], [0], [0], [1], [0, 0, 1, 1], [], []>} : vector<1x128xf32>, vector<128x128xf32>, vector<1x128xf32> -> vector<1x128xf32>
    %58 = arith.addf %53, %57 : vector<1x128xf32>
    %c7 = arith.constant 7 : index
    %c0_62 = arith.constant 0 : index
    %59 = vector.load %arg7[%c7, %c0_62] : memref<16x128xf32, #tpu.memory_space<vmem>>, vector<1x128xf32>
    %c7_63 = arith.constant 7 : index
    %c0_64 = arith.constant 0 : index
    %c0_65 = arith.constant 0 : index
    %60 = vector.load %arg4[%c7_63, %c0_64, %c0_65] : memref<16x128x128xf32, #tpu.memory_space<vmem>>, vector<1x128x128xf32>
    %61 = vector.shape_cast %60 : vector<1x128x128xf32> to vector<128x128xf32>
    %cst_66 = arith.constant dense<0.000000e+00> : vector<1x128xf32>
    %62 = tpu.matmul %59, %61, %cst_66 {dimension_numbers = #tpu.dot_dimension_numbers<[1], [0], [0], [1], [0, 0, 1, 1], [], []>} : vector<1x128xf32>, vector<128x128xf32>, vector<1x128xf32> -> vector<1x128xf32>
    %63 = arith.addf %58, %62 : vector<1x128xf32>
    %c8 = arith.constant 8 : index
    %c0_67 = arith.constant 0 : index
    %64 = vector.load %arg7[%c8, %c0_67] : memref<16x128xf32, #tpu.memory_space<vmem>>, vector<1x128xf32>
    %c8_68 = arith.constant 8 : index
    %c0_69 = arith.constant 0 : index
    %c0_70 = arith.constant 0 : index
    %65 = vector.load %arg4[%c8_68, %c0_69, %c0_70] : memref<16x128x128xf32, #tpu.memory_space<vmem>>, vector<1x128x128xf32>
    %66 = vector.shape_cast %65 : vector<1x128x128xf32> to vector<128x128xf32>
    %cst_71 = arith.constant dense<0.000000e+00> : vector<1x128xf32>
    %67 = tpu.matmul %64, %66, %cst_71 {dimension_numbers = #tpu.dot_dimension_numbers<[1], [0], [0], [1], [0, 0, 1, 1], [], []>} : vector<1x128xf32>, vector<128x128xf32>, vector<1x128xf32> -> vector<1x128xf32>
    %68 = arith.addf %63, %67 : vector<1x128xf32>
    %c9 = arith.constant 9 : index
    %c0_72 = arith.constant 0 : index
    %69 = vector.load %arg7[%c9, %c0_72] : memref<16x128xf32, #tpu.memory_space<vmem>>, vector<1x128xf32>
    %c9_73 = arith.constant 9 : index
    %c0_74 = arith.constant 0 : index
    %c0_75 = arith.constant 0 : index
    %70 = vector.load %arg4[%c9_73, %c0_74, %c0_75] : memref<16x128x128xf32, #tpu.memory_space<vmem>>, vector<1x128x128xf32>
    %71 = vector.shape_cast %70 : vector<1x128x128xf32> to vector<128x128xf32>
    %cst_76 = arith.constant dense<0.000000e+00> : vector<1x128xf32>
    %72 = tpu.matmul %69, %71, %cst_76 {dimension_numbers = #tpu.dot_dimension_numbers<[1], [0], [0], [1], [0, 0, 1, 1], [], []>} : vector<1x128xf32>, vector<128x128xf32>, vector<1x128xf32> -> vector<1x128xf32>
    %73 = arith.addf %68, %72 : vector<1x128xf32>
    %c10 = arith.constant 10 : index
    %c0_77 = arith.constant 0 : index
    %74 = vector.load %arg7[%c10, %c0_77] : memref<16x128xf32, #tpu.memory_space<vmem>>, vector<1x128xf32>
    %c10_78 = arith.constant 10 : index
    %c0_79 = arith.constant 0 : index
    %c0_80 = arith.constant 0 : index
    %75 = vector.load %arg4[%c10_78, %c0_79, %c0_80] : memref<16x128x128xf32, #tpu.memory_space<vmem>>, vector<1x128x128xf32>
    %76 = vector.shape_cast %75 : vector<1x128x128xf32> to vector<128x128xf32>
    %cst_81 = arith.constant dense<0.000000e+00> : vector<1x128xf32>
    %77 = tpu.matmul %74, %76, %cst_81 {dimension_numbers = #tpu.dot_dimension_numbers<[1], [0], [0], [1], [0, 0, 1, 1], [], []>} : vector<1x128xf32>, vector<128x128xf32>, vector<1x128xf32> -> vector<1x128xf32>
    %78 = arith.addf %73, %77 : vector<1x128xf32>
    %c11 = arith.constant 11 : index
    %c0_82 = arith.constant 0 : index
    %79 = vector.load %arg7[%c11, %c0_82] : memref<16x128xf32, #tpu.memory_space<vmem>>, vector<1x128xf32>
    %c11_83 = arith.constant 11 : index
    %c0_84 = arith.constant 0 : index
    %c0_85 = arith.constant 0 : index
    %80 = vector.load %arg4[%c11_83, %c0_84, %c0_85] : memref<16x128x128xf32, #tpu.memory_space<vmem>>, vector<1x128x128xf32>
    %81 = vector.shape_cast %80 : vector<1x128x128xf32> to vector<128x128xf32>
    %cst_86 = arith.constant dense<0.000000e+00> : vector<1x128xf32>
    %82 = tpu.matmul %79, %81, %cst_86 {dimension_numbers = #tpu.dot_dimension_numbers<[1], [0], [0], [1], [0, 0, 1, 1], [], []>} : vector<1x128xf32>, vector<128x128xf32>, vector<1x128xf32> -> vector<1x128xf32>
    %83 = arith.addf %78, %82 : vector<1x128xf32>
    %c12 = arith.constant 12 : index
    %c0_87 = arith.constant 0 : index
    %84 = vector.load %arg7[%c12, %c0_87] : memref<16x128xf32, #tpu.memory_space<vmem>>, vector<1x128xf32>
    %c12_88 = arith.constant 12 : index
    %c0_89 = arith.constant 0 : index
    %c0_90 = arith.constant 0 : index
    %85 = vector.load %arg4[%c12_88, %c0_89, %c0_90] : memref<16x128x128xf32, #tpu.memory_space<vmem>>, vector<1x128x128xf32>
    %86 = vector.shape_cast %85 : vector<1x128x128xf32> to vector<128x128xf32>
    %cst_91 = arith.constant dense<0.000000e+00> : vector<1x128xf32>
    %87 = tpu.matmul %84, %86, %cst_91 {dimension_numbers = #tpu.dot_dimension_numbers<[1], [0], [0], [1], [0, 0, 1, 1], [], []>} : vector<1x128xf32>, vector<128x128xf32>, vector<1x128xf32> -> vector<1x128xf32>
    %88 = arith.addf %83, %87 : vector<1x128xf32>
    %c13 = arith.constant 13 : index
    %c0_92 = arith.constant 0 : index
    %89 = vector.load %arg7[%c13, %c0_92] : memref<16x128xf32, #tpu.memory_space<vmem>>, vector<1x128xf32>
    %c13_93 = arith.constant 13 : index
    %c0_94 = arith.constant 0 : index
    %c0_95 = arith.constant 0 : index
    %90 = vector.load %arg4[%c13_93, %c0_94, %c0_95] : memref<16x128x128xf32, #tpu.memory_space<vmem>>, vector<1x128x128xf32>
    %91 = vector.shape_cast %90 : vector<1x128x128xf32> to vector<128x128xf32>
    %cst_96 = arith.constant dense<0.000000e+00> : vector<1x128xf32>
    %92 = tpu.matmul %89, %91, %cst_96 {dimension_numbers = #tpu.dot_dimension_numbers<[1], [0], [0], [1], [0, 0, 1, 1], [], []>} : vector<1x128xf32>, vector<128x128xf32>, vector<1x128xf32> -> vector<1x128xf32>
    %93 = arith.addf %88, %92 : vector<1x128xf32>
    %c14 = arith.constant 14 : index
    %c0_97 = arith.constant 0 : index
    %94 = vector.load %arg7[%c14, %c0_97] : memref<16x128xf32, #tpu.memory_space<vmem>>, vector<1x128xf32>
    %c14_98 = arith.constant 14 : index
    %c0_99 = arith.constant 0 : index
    %c0_100 = arith.constant 0 : index
    %95 = vector.load %arg4[%c14_98, %c0_99, %c0_100] : memref<16x128x128xf32, #tpu.memory_space<vmem>>, vector<1x128x128xf32>
    %96 = vector.shape_cast %95 : vector<1x128x128xf32> to vector<128x128xf32>
    %cst_101 = arith.constant dense<0.000000e+00> : vector<1x128xf32>
    %97 = tpu.matmul %94, %96, %cst_101 {dimension_numbers = #tpu.dot_dimension_numbers<[1], [0], [0], [1], [0, 0, 1, 1], [], []>} : vector<1x128xf32>, vector<128x128xf32>, vector<1x128xf32> -> vector<1x128xf32>
    %98 = arith.addf %93, %97 : vector<1x128xf32>
    %c15 = arith.constant 15 : index
    %c0_102 = arith.constant 0 : index
    %99 = vector.load %arg7[%c15, %c0_102] : memref<16x128xf32, #tpu.memory_space<vmem>>, vector<1x128xf32>
    %c15_103 = arith.constant 15 : index
    %c0_104 = arith.constant 0 : index
    %c0_105 = arith.constant 0 : index
    %100 = vector.load %arg4[%c15_103, %c0_104, %c0_105] : memref<16x128x128xf32, #tpu.memory_space<vmem>>, vector<1x128x128xf32>
    %101 = vector.shape_cast %100 : vector<1x128x128xf32> to vector<128x128xf32>
    %cst_106 = arith.constant dense<0.000000e+00> : vector<1x128xf32>
    %102 = tpu.matmul %99, %101, %cst_106 {dimension_numbers = #tpu.dot_dimension_numbers<[1], [0], [0], [1], [0, 0, 1, 1], [], []>} : vector<1x128xf32>, vector<128x128xf32>, vector<1x128xf32> -> vector<1x128xf32>
    %103 = arith.addf %98, %102 : vector<1x128xf32>
    %104 = vector.shape_cast %103 : vector<1x128xf32> to vector<1x1x128xf32>
    %c0_107 = arith.constant 0 : index
    %c0_108 = arith.constant 0 : index
    %c0_109 = arith.constant 0 : index
    %105 = vector.load %arg6[%c0_107, %c0_108, %c0_109] : memref<1x1x128xf32, #tpu.memory_space<vmem>>, vector<1x1x128xf32>
    tpu.vector_store %arg6[%c0_107, %c0_108, %c0_109], %104 {strides = array<i32>} : memref<1x1x128xf32, #tpu.memory_space<vmem>>, vector<1x1x128xf32>,
    return
  }
  func.func @transform_0(%arg0: i32) -> (i32, i32, i32) {
    %c0_i32 = arith.constant 0 : i32
    %c0_i32_0 = arith.constant 0 : i32
    %c0_i32_1 = arith.constant 0 : i32
    return %arg0, %c0_i32, %c0_i32_0 : i32, i32, i32
  }
  func.func @transform_1(%arg0: i32) -> (i32, i32, i32) {
    %c0_i32 = arith.constant 0 : i32
    %c0_i32_0 = arith.constant 0 : i32
    %c0_i32_1 = arith.constant 0 : i32
    %c0_i32_2 = arith.constant 0 : i32
    return %c0_i32, %c0_i32_0, %c0_i32_1 : i32, i32, i32
  }
  func.func @transform_2(%arg0: i32) -> (i32, i32) {
    %c0_i32 = arith.constant 0 : i32
    %c0_i32_0 = arith.constant 0 : i32
    %c0_i32_1 = arith.constant 0 : i32
    return %c0_i32, %c0_i32_0 : i32, i32
  }
  func.func @transform_3(%arg0: i32) -> (i32, i32, i32) {
    %c0_i32 = arith.constant 0 : i32
    %c0_i32_0 = arith.constant 0 : i32
    %c0_i32_1 = arith.constant 0 : i32
    %c0_i32_2 = arith.constant 0 : i32
    return %c0_i32, %c0_i32_0, %c0_i32_1 : i32, i32, i32
  }
  func.func @transform_4(%arg0: i32) -> (i32, i32) {
    %c0_i32 = arith.constant 0 : i32
    %c0_i32_0 = arith.constant 0 : i32
    %c0_i32_1 = arith.constant 0 : i32
    return %c0_i32, %c0_i32_0 : i32, i32
  }
  func.func @transform_5(%arg0: i32) -> (i32, i32, i32) {
    %c0_i32 = arith.constant 0 : i32
    %c0_i32_0 = arith.constant 0 : i32
    %c0_i32_1 = arith.constant 0 : i32
    return %arg0, %c0_i32, %c0_i32_0 : i32, i32, i32
  }
}

</mosaic_0001>

<llo_original>
// kernel: _fused_forward.1
$region0: #{_fused_forward.1}
  #allocation0 [shape = 'u32[]', space=smem, size = 0x4, offset = 0x4, fixed_abs, tag = 'smem constant byte address 0x4 - core index']
  #allocation1 [shape = 'u32[144,128]{1,0:T(1,128)}', space=vmem, size = 0x12000, scoped, tag = 'internal scratch']
  #allocation2 [shape = 'f32[16,128]{1,0:T(8,128)}', space=vmem, size = 0x2000, scoped, tag = 'scratch operand']
  %s0 = inlined_call_operand.vmem [shape: f32[2,18,72], index: 0, kind: input, shape index: {}]
  %s1 = inlined_call_operand.vmem [shape: f32[3,72,128], index: 1, kind: input, shape index: {}]
  %s2 = inlined_call_operand.vmem [shape: f32[1,128], index: 2, kind: input, shape index: {}]
  %s3 = inlined_call_operand.hbm [shape: f32[16,128,128], index: 3, kind: input, shape index: {}]
  %s4 = inlined_call_operand.vmem [shape: f32[1,128], index: 4, kind: input, shape index: {}]
  %s5 = inlined_call_operand.hbm [shape: f32[2,1,128], index: 5, kind: output, shape index: {}]
  %s6 = sld [smem:[#allocation0]]
  $region57: #{_fused_forward.1} parent=0
    _
  %s8 = ssub.s32 1, %s6
  %s9 = scalar_select 0, %s8, %s6
  $region1: #{_fused_forward.1} parent=0
    #allocation3 [shape = 'u8[1048576]{0}', space=vmem, size = 0x100000, scoped, tag = 'input window, operand 3, single buffered']
    #allocation4 [shape = 's32[2]{0}', space=sflag, size = 0x8, scoped, tag = 'scoped memory for _fused_forward.1']
    #allocation5 [shape = 's32[2]{0}', space=sflag, size = 0x8, scoped, tag = 'scoped memory for _fused_forward.1']
    #allocation6 [shape = 'u8[1024]{0}', space=vmem, size = 0x400, scoped, tag = 'output window, operand 0']
    %10 = vsyncpa [#allocation4], 0
    %11 = vsyncpa [#allocation5], 0
    %s12 = scalar_lea.sflag [#allocation5], 1
    %13 = vsyncpa %s12, 0
    loop: start=0, step=1, limit=4
    $region2: #{_fused_forward.1} parent=1 // loop_pre_header
      _
    $region3: #{_fused_forward.1} parent=1 // loop_header
      %s15 = sphi 0, %s19
      %p16 = scmp.ge.s32.totalorder %s15, 4
      %s25 = sphi 0, %s27
      %s28 = sphi 0, %s25
      %s29 = sphi 0, %s28
      %s45 = sphi 0, %s29
      %s49 = sphi 0, %s49
      %s51 = sphi 0, %s49
      %s52 = sphi 0, %s51
      %s66 = sphi 0, %s52
      %s70 = sphi 0, %s70
      %s72 = sphi 0, %s70
      %s73 = sphi 0, %s72
      %s87 = sphi 0, %s73
      %s91 = sphi 0, %s91
      %s93 = sphi 0, %s91
      %s94 = sphi 0, %s93
      %s108 = sphi 0, %s94
      %s112 = sphi 0, %s112
      %s114 = sphi 0, %s112
      %s115 = sphi 0, %s114
      %s129 = sphi 0, %s115
      %s135 = sphi 0, %s137
      %s138 = sphi 0, %s135
      %s139 = sphi 0, %s138
      %s155 = sphi 0, %s139
    $region4: #{_fused_forward.1} parent=1 // loop_header_branch
      %18 = sbr.rel (%p16) target = $region8
    $region5: #{_fused_forward.1} parent=1 // loop_body
      %s20 = ssub.s32 %s15, 1
      %s21 = ssub.s32 %s15, 2
      %s22 = sadd.s32 %s15, 1
      %s23 = ssub.s32 %s15, %s22
      %p24 = scmp.eq.s32.totalorder %s23, 0
      %s26 = sadd.s32 %s25, 1
      %s27 = scalar_select %p24, %s25, %s26
      %p30 = pneg %p24
      %p31 = scmp.eq.s32.totalorder %s15, 1
      %p32 = por %p30, %p31
      %p33 = scmp.ne.s32.totalorder %s25, %s28
      %p34 = scmp.eq.s32.totalorder %s15, 0
      %p35 = por %p33, %p34
      %p36 = scmp.ne.s32.totalorder %s25, %s28
      %p37 = scmp.eq.s32.totalorder %s20, 1
      %p38 = por %p36, %p37
      %p39 = scmp.ne.s32.totalorder %s28, %s29
      %p40 = scmp.eq.s32.totalorder %s20, 0
      %p41 = por %p39, %p40
      %p42 = scmp.ne.s32.totalorder %s28, %s29
      %p43 = scmp.eq.s32.totalorder %s21, 1
      %p44 = por %p42, %p43
      %p46 = scmp.ne.s32.totalorder %s29, %s45
      %p47 = scmp.eq.s32.totalorder %s21, 0
      %p48 = por %p46, %p47
      %s50 = sadd.s32 %s49, 1
      %p53 = scmp.eq.s32.totalorder %s15, 1
      %p54 = scmp.ne.s32.totalorder %s49, %s51
      %p55 = scmp.eq.s32.totalorder %s15, 0
      %p56 = por %p54, %p55
      %p57 = scmp.ne.s32.totalorder %s49, %s51
      %p58 = scmp.eq.s32.totalorder %s20, 1
      %p59 = por %p57, %p58
      %p60 = scmp.ne.s32.totalorder %s51, %s52
      %p61 = scmp.eq.s32.totalorder %s20, 0
      %p62 = por %p60, %p61
      %p63 = scmp.ne.s32.totalorder %s51, %s52
      %p64 = scmp.eq.s32.totalorder %s21, 1
      %p65 = por %p63, %p64
      %p67 = scmp.ne.s32.totalorder %s52, %s66
      %p68 = scmp.eq.s32.totalorder %s21, 0
      %p69 = por %p67, %p68
      %s71 = sadd.s32 %s70, 1
      %p74 = scmp.eq.s32.totalorder %s15, 1
      %p75 = scmp.ne.s32.totalorder %s70, %s72
      %p76 = scmp.eq.s32.totalorder %s15, 0
      %p77 = por %p75, %p76
      %p78 = scmp.ne.s32.totalorder %s70, %s72
      %p79 = scmp.eq.s32.totalorder %s20, 1
      %p80 = por %p78, %p79
      %p81 = scmp.ne.s32.totalorder %s72, %s73
      %p82 = scmp.eq.s32.totalorder %s20, 0
      %p83 = por %p81, %p82
      %p84 = scmp.ne.s32.totalorder %s72, %s73
      %p85 = scmp.eq.s32.totalorder %s21, 1
      %p86 = por %p84, %p85
      %p88 = scmp.ne.s32.totalorder %s73, %s87
      %p89 = scmp.eq.s32.totalorder %s21, 0
      %p90 = por %p88, %p89
      %s92 = sadd.s32 %s91, 1
      %p95 = scmp.eq.s32.totalorder %s15, 1
      %p96 = scmp.ne.s32.totalorder %s91, %s93
      %p97 = scmp.eq.s32.totalorder %s15, 0
      %p98 = por %p96, %p97
      %p99 = scmp.ne.s32.totalorder %s91, %s93
      %p100 = scmp.eq.s32.totalorder %s20, 1
      %p101 = por %p99, %p100
      %p102 = scmp.ne.s32.totalorder %s93, %s94
      %p103 = scmp.eq.s32.totalorder %s20, 0
      %p104 = por %p102, %p103
      %p105 = scmp.ne.s32.totalorder %s93, %s94
      %p106 = scmp.eq.s32.totalorder %s21, 1
      %p107 = por %p105, %p106
      %p109 = scmp.ne.s32.totalorder %s94, %s108
      %p110 = scmp.eq.s32.totalorder %s21, 0
      %p111 = por %p109, %p110
      %s113 = sadd.s32 %s112, 1
      %p116 = scmp.eq.s32.totalorder %s15, 1
      %p117 = scmp.ne.s32.totalorder %s112, %s114
      %p118 = scmp.eq.s32.totalorder %s15, 0
      %p119 = por %p117, %p118
      %p120 = scmp.ne.s32.totalorder %s112, %s114
      %p121 = scmp.eq.s32.totalorder %s20, 1
      %p122 = por %p120, %p121
      %p123 = scmp.ne.s32.totalorder %s114, %s115
      %p124 = scmp.eq.s32.totalorder %s20, 0
      %p125 = por %p123, %p124
      %p126 = scmp.ne.s32.totalorder %s114, %s115
      %p127 = scmp.eq.s32.totalorder %s21, 1
      %p128 = por %p126, %p127
      %p130 = scmp.ne.s32.totalorder %s115, %s129
      %p131 = scmp.eq.s32.totalorder %s21, 0
      %p132 = por %p130, %p131
      %s133 = ssub.s32 %s15, %s22
      %p134 = scmp.eq.s32.totalorder %s133, 0
      %s136 = sadd.s32 %s135, 1
      %s137 = scalar_select %p134, %s135, %s136
      %p140 = pneg %p134
      %p141 = scmp.eq.s32.totalorder %s15, 1
      %p142 = por %p140, %p141
      %p143 = scmp.ne.s32.totalorder %s135, %s138
      %p144 = scmp.eq.s32.totalorder %s15, 0
      %p145 = por %p143, %p144
      %p146 = scmp.ne.s32.totalorder %s135, %s138
      %p147 = scmp.eq.s32.totalorder %s20, 1
      %p148 = por %p146, %p147
      %p149 = scmp.ne.s32.totalorder %s138, %s139
      %p150 = scmp.eq.s32.totalorder %s20, 0
      %p151 = por %p149, %p150
      %p152 = scmp.ne.s32.totalorder %s138, %s139
      %p153 = scmp.eq.s32.totalorder %s21, 1
      %p154 = por %p152, %p153
      %p156 = scmp.ne.s32.totalorder %s139, %s155
      %p157 = scmp.eq.s32.totalorder %s21, 0
      %p158 = por %p156, %p157
      %p159 = scmp.le.s32.totalorder 1, %s15
      %p160 = scmp.lt.s32.totalorder %s15, 3
      %p161 = pnand %p159, %p160
      %p162 = pneg %p161
      // Predicated region
      $region9: #{_fused_forward.1} parent=5 // pred_check
        _
      $region10: #{_fused_forward.1} parent=5 // pred_check_branch
        %164 = sbr.rel (%p161) target = $region12
      $region11: #{_fused_forward.1} parent=5 // pred_region
        %s165 = ssub.s32 %s15, 1
        // Predicated region
        $region13: #{_fused_forward.1} parent=11 // pred_check
          %p166 = pneg %p62
        $region14: #{_fused_forward.1} parent=11 // pred_check_branch
          %168 = sbr.rel (%p166) target = $region16
        $region15: #{_fused_forward.1} parent=11 // pred_region
          _
        $region16: #{_fused_forward.1} parent=11 // pred_fallthru
          _
        // Predicated region
        $region17: #{_fused_forward.1} parent=11 // pred_check
          %p169 = pneg %p83
        $region18: #{_fused_forward.1} parent=11 // pred_check_branch
          %171 = sbr.rel (%p169) target = $region20
        $region19: #{_fused_forward.1} parent=11 // pred_region
          _
        $region20: #{_fused_forward.1} parent=11 // pred_fallthru
          _
        // Predicated region
        $region21: #{_fused_forward.1} parent=11 // pred_check
          %p172 = pneg %p104
        $region22: #{_fused_forward.1} parent=11 // pred_check_branch
          %174 = sbr.rel (%p172) target = $region24
        $region23: #{_fused_forward.1} parent=11 // pred_region
          %s176 = ssub.s32 32768, 32768
          %177 = vsyncadd [#allocation4], %s176
          %s178 = sshll.u32 [#allocation3], 4
          %s179 = int_to_ptr.vmem [resolvable:$true] %s178
          %184 = dma.hbm_to_vmem [thread:$0]  %s3, 32768, %s179, [#allocation4], 128, 128, 8
        $region24: #{_fused_forward.1} parent=11 // pred_fallthru
          _
        // Predicated region
        $region25: #{_fused_forward.1} parent=11 // pred_check
          %p185 = pneg %p125
        $region26: #{_fused_forward.1} parent=11 // pred_check_branch
          %187 = sbr.rel (%p185) target = $region28
        $region27: #{_fused_forward.1} parent=11 // pred_region
          _
        $region28: #{_fused_forward.1} parent=11 // pred_fallthru
          _
      $region12: #{_fused_forward.1} parent=5 // pred_fallthru
        _
      %p188 = scmp.lt.s32.totalorder %s15, 2
      // Predicated region
      $region29: #{_fused_forward.1} parent=5 // pred_check
        %p189 = pneg %p188
      $region30: #{_fused_forward.1} parent=5 // pred_check_branch
        %191 = sbr.rel (%p189) target = $region32
      $region31: #{_fused_forward.1} parent=5 // pred_region
        // Predicated region
        $region33: #{_fused_forward.1} parent=31 // pred_check
          %p192 = pneg %p35
        $region34: #{_fused_forward.1} parent=31 // pred_check_branch
          %194 = sbr.rel (%p192) target = $region36
        $region35: #{_fused_forward.1} parent=31 // pred_region
          %p195 = scmp.lt.s32.totalorder %s15, 1
          %s196 = scalar_select %p195, %s15, 1
          %s197 = smul.addr %s196, 3
          %s198 = smul.addr %s197, 8
          %s199 = scalar_lea.vmem %s0, %s198
        $region36: #{_fused_forward.1} parent=31 // pred_fallthru
          _
      $region32: #{_fused_forward.1} parent=5 // pred_fallthru
        _
      %p200 = scmp.le.s32.totalorder 1, %s15
      %p201 = scmp.lt.s32.totalorder %s15, 3
      %p202 = pnand %p200, %p201
      %p203 = pneg %p202
      // Predicated region
      $region37: #{_fused_forward.1} parent=5 // pred_check
        _
      $region38: #{_fused_forward.1} parent=5 // pred_check_branch
        %205 = sbr.rel (%p202) target = $region40
      $region39: #{_fused_forward.1} parent=5 // pred_region
        %s206 = ssub.s32 %s15, 1
        // Predicated region
        $region41: #{_fused_forward.1} parent=39 // pred_check
          %p207 = pneg %p104
        $region42: #{_fused_forward.1} parent=39 // pred_check_branch
          %209 = sbr.rel (%p207) target = $region44
        $region43: #{_fused_forward.1} parent=39 // pred_region
          %210 = dma.done [#allocation4], 32768
        $region44: #{_fused_forward.1} parent=39 // pred_fallthru
          _
        %p211 = scmp.lt.s32.totalorder %s20, 1
        %s212 = scalar_select %p211, %s20, 1
        %s213 = smul.addr %s212, 3
        %s214 = smul.addr %s213, 8
        %s215 = scalar_lea.vmem %s0, %s214
        %p216 = pneg %p41
        %p217 = pneg %p38
        %p218 = pneg %p62
        %p219 = pneg %p59
        %p220 = pneg %p83
        %p221 = pneg %p80
        %p222 = pneg %p104
        %p223 = pneg %p101
        %p224 = pneg %p125
        %p225 = pneg %p122
        %p226 = pneg %p151
        %p227 = pneg %p148
        %s228 = sand.u32 %s138, 1
        %s229 = scalar_lea.sflag [#allocation5], %s228
        %s230 = sand.u32 %s138, 1
        %s231 = scalar_lea.vmem [#allocation6], %s230
        %p232 = scmp.lt.s32.totalorder %s20, 1
        %s233 = scalar_select %p232, %s20, 1
        %s234 = smul.addr %s233, 3
        %s235 = smul.addr %s234, 8
        %s236 = scalar_lea.vmem %s0, %s235
        %v237 = vld [vmem:[%s236] sm:$0xff]
        %v238 = vld [vmem:[%s236 + $0x8] sm:$0xff]
        %v239 = vld [vmem:[%s1] sm:$0xff]
        %v240 = vld [vmem:[%s1 + $0x8] sm:$0xff]
        %v241 = vld [vmem:[%s1 + $0x10] sm:$0xff]
        %v242 = vld [vmem:[%s1 + $0x18] sm:$0xff]
        %v243 = vld [vmem:[%s1 + $0x20] sm:$0xff]
        %v244 = vld [vmem:[%s1 + $0x28] sm:$0xff]
        %v245 = vld [vmem:[%s1 + $0x30] sm:$0xff]
        %v246 = vld [vmem:[%s1 + $0x38] sm:$0xff]
        %v247 = vld [vmem:[%s1 + $0x40] sm:$0xff]
        %v248 = vld [vmem:[%s236 + $0x1] sm:$0xff]
        %v249 = vld [vmem:[%s236 + $0x9] sm:$0xff]
        %s250 = scalar_lea.vmem %s1, 72
        %v251 = vld [vmem:[%s250] sm:$0xff]
        %v252 = vld [vmem:[%s250 + $0x8] sm:$0xff]
        %v253 = vld [vmem:[%s250 + $0x10] sm:$0xff]
        %v254 = vld [vmem:[%s250 + $0x18] sm:$0xff]
        %v255 = vld [vmem:[%s250 + $0x20] sm:$0xff]
        %v256 = vld [vmem:[%s250 + $0x28] sm:$0xff]
        %v257 = vld [vmem:[%s250 + $0x30] sm:$0xff]
        %v258 = vld [vmem:[%s250 + $0x38] sm:$0xff]
        %v259 = vld [vmem:[%s250 + $0x40] sm:$0xff]
        %vm260 = vcmask 588800
        %v262 = vsel %vm260, %v248, 0
        %v265 = vsel %vm260, %v249, 0
        %267 = vmatprep.subr.mxu0 0.0
        %268 = vmatpush1.msra.mxu0 0.0
        %269 = vmatprep.subr.mxu0 0.0
        %270 = vmatpush1.msra.mxu0 0.0
        %271 = vmatprep.subr.mxu0 0.0
        %272 = vmatpush1.msra.mxu0 0.0
        %273 = vmatprep.subr.mxu0 0.0
        %274 = vmatpush1.msra.mxu0 0.0
        %275 = vmatprep.subr.mxu0 0.0
        %276 = vmatpush1.msra.mxu0 0.0
        %277 = vmatprep.subr.mxu0 0.0
        %278 = vmatpush1.msra.mxu0 0.0
        %279 = vmatprep.subr.mxu0 0.0
        %280 = vmatpush1.msra.mxu0 0.0
        %281 = vmatprep.subr.mxu0 0.0
        %282 = vmatpush1.msra.mxu0 %v259
        %283 = vmatprep.subr.mxu0 0.0
        %284 = vmatpush1.msra.mxu0 %v258
        %285 = vmatprep.subr.mxu0 0.0
        %286 = vmatpush1.msra.mxu0 %v257
        %287 = vmatprep.subr.mxu0 0.0
        %288 = vmatpush1.msra.mxu0 %v256
        %289 = vmatprep.subr.mxu0 0.0
        %290 = vmatpush1.msra.mxu0 %v255
        %291 = vmatprep.subr.mxu0 0.0
        %292 = vmatpush1.msra.mxu0 %v254
        %293 = vmatprep.subr.mxu0 0.0
        %294 = vmatpush1.msra.mxu0 %v253
        %295 = vmatprep.subr.mxu0 0.0
        %296 = vmatpush1.msra.mxu0 %v252
        %297 = vmatprep.subr.mxu0 0.0
        %298 = vmatpush1.msra.mxu0 %v251
        %299 = vmatprep.subr.mxu0 0.0
        %300 = vmatpush2.msra.mxu0 0.0
        %301 = vmatprep.subr.mxu0 0.0
        %302 = vmatpush2.msra.mxu0 0.0
        %303 = vmatprep.subr.mxu0 0.0
        %304 = vmatpush2.msra.mxu0 0.0
        %305 = vmatprep.subr.mxu0 0.0
        %306 = vmatpush2.msra.mxu0 0.0
        %307 = vmatprep.subr.mxu0 0.0
        %308 = vmatpush2.msra.mxu0 0.0
        %309 = vmatprep.subr.mxu0 0.0
        %310 = vmatpush2.msra.mxu0 0.0
        %311 = vmatprep.subr.mxu0 0.0
        %312 = vmatpush2.msra.mxu0 0.0
        %313 = vmatprep.subr.mxu0 0.0
        %314 = vmatpush2.msra.mxu0 0.0
        %315 = vmatprep.subr.mxu0 0.0
        %316 = vmatpush2.msra.mxu0 0.0
        %317 = vmatprep.subr.mxu0 0.0
        %318 = vmatpush2.msra.mxu0 0.0
        %319 = vmatprep.subr.mxu0 0.0
        %320 = vmatpush2.msra.mxu0 0.0
        %321 = vmatprep.subr.mxu0 0.0
        %322 = vmatpush2.msra.mxu0 0.0
        %323 = vmatprep.subr.mxu0 0.0
        %324 = vmatpush2.msra.mxu0 0.0
        %325 = vmatprep.subr.mxu0 0.0
        %326 = vmatpush2.msra.mxu0 0.0
        %327 = vmatprep.subr.mxu0 0.0
        %328 = vmatpush2.msra.mxu0 0.0
        %329 = vmatprep.subr.mxu0 0.0
        %330 = vmatpush2.msra.mxu0 0.0
        %331 = vmatprep.mubr.f32.mxu0 0.0
        %332 = vmatmul.mubr.f32.gmra.mxu0 %v262
        %v333 = vpop.f32.mrf.mxu0
        %v334 = vadd.f32 0.0, %v333
        %v335 = vpop.f32.mrf.mxu0
        %336 = vmatprep.mubr.f32.mxu0 0.0
        %337 = vmatmul.mubr.f32.gmra.mxu0 %v265
        %v338 = vpop.f32.mrf.mxu0
        %v339 = vadd.f32 0.0, %v338
        %v340 = vpop.f32.mrf.mxu0
        %341 = vdwg.mxu0
        %v343 = vsel %vm260, %v237, 0
        %v346 = vsel %vm260, %v238, 0
        %348 = vmatprep.subr.mxu0 0.0
        %349 = vmatpush1.msra.mxu0 0.0
        %350 = vmatprep.subr.mxu0 0.0
        %351 = vmatpush1.msra.mxu0 0.0
        %352 = vmatprep.subr.mxu0 0.0
        %353 = vmatpush1.msra.mxu0 0.0
        %354 = vmatprep.subr.mxu0 0.0
        %355 = vmatpush1.msra.mxu0 0.0
        %356 = vmatprep.subr.mxu0 0.0
        %357 = vmatpush1.msra.mxu0 0.0
        %358 = vmatprep.subr.mxu0 0.0
        %359 = vmatpush1.msra.mxu0 0.0
        %360 = vmatprep.subr.mxu0 0.0
        %361 = vmatpush1.msra.mxu0 0.0
        %362 = vmatprep.subr.mxu0 0.0
        %363 = vmatpush1.msra.mxu0 %v247
        %364 = vmatprep.subr.mxu0 0.0
        %365 = vmatpush1.msra.mxu0 %v246
        %366 = vmatprep.subr.mxu0 0.0
        %367 = vmatpush1.msra.mxu0 %v245
        %368 = vmatprep.subr.mxu0 0.0
        %369 = vmatpush1.msra.mxu0 %v244
        %370 = vmatprep.subr.mxu0 0.0
        %371 = vmatpush1.msra.mxu0 %v243
        %372 = vmatprep.subr.mxu0 0.0
        %373 = vmatpush1.msra.mxu0 %v242
        %374 = vmatprep.subr.mxu0 0.0
        %375 = vmatpush1.msra.mxu0 %v241
        %376 = vmatprep.subr.mxu0 0.0
        %377 = vmatpush1.msra.mxu0 %v240
        %378 = vmatprep.subr.mxu0 0.0
        %379 = vmatpush1.msra.mxu0 %v239
        %380 = vmatprep.subr.mxu0 0.0
        %381 = vmatpush2.msra.mxu0 0.0
        %382 = vmatprep.subr.mxu0 0.0
        %383 = vmatpush2.msra.mxu0 0.0
        %384 = vmatprep.subr.mxu0 0.0
        %385 = vmatpush2.msra.mxu0 0.0
        %386 = vmatprep.subr.mxu0 0.0
        %387 = vmatpush2.msra.mxu0 0.0
        %388 = vmatprep.subr.mxu0 0.0
        %389 = vmatpush2.msra.mxu0 0.0
        %390 = vmatprep.subr.mxu0 0.0
        %391 = vmatpush2.msra.mxu0 0.0
        %392 = vmatprep.subr.mxu0 0.0
        %393 = vmatpush2.msra.mxu0 0.0
        %394 = vmatprep.subr.mxu0 0.0
        %395 = vmatpush2.msra.mxu0 0.0
        %396 = vmatprep.subr.mxu0 0.0
        %397 = vmatpush2.msra.mxu0 0.0
        %398 = vmatprep.subr.mxu0 0.0
        %399 = vmatpush2.msra.mxu0 0.0
        %400 = vmatprep.subr.mxu0 0.0
        %401 = vmatpush2.msra.mxu0 0.0
        %402 = vmatprep.subr.mxu0 0.0
        %403 = vmatpush2.msra.mxu0 0.0
        %404 = vmatprep.subr.mxu0 0.0
        %405 = vmatpush2.msra.mxu0 0.0
        %406 = vmatprep.subr.mxu0 0.0
        %407 = vmatpush2.msra.mxu0 0.0
        %408 = vmatprep.subr.mxu0 0.0
        %409 = vmatpush2.msra.mxu0 0.0
        %410 = vmatprep.subr.mxu0 0.0
        %411 = vmatpush2.msra.mxu0 0.0
        %412 = vmatprep.mubr.f32.mxu0 0.0
        %413 = vmatmul.mubr.f32.gmra.mxu0 %v343
        %v414 = vpop.f32.mrf.mxu0
        %v415 = vadd.f32 %v334, %v414
        %v416 = vpop.f32.mrf.mxu0
        %417 = vmatprep.mubr.f32.mxu0 0.0
        %418 = vmatmul.mubr.f32.gmra.mxu0 %v346
        %v419 = vpop.f32.mrf.mxu0
        %v420 = vadd.f32 %v339, %v419
        %v421 = vpop.f32.mrf.mxu0
        %422 = vdwg.mxu0
        %v423 = vld [vmem:[%s236 + $0x2] sm:$0xff]
        %v424 = vld [vmem:[%s236 + $0xa] sm:$0xff]
        %s425 = scalar_lea.vmem %s1, 144
        %v426 = vld [vmem:[%s425] sm:$0xff]
        %v427 = vld [vmem:[%s425 + $0x8] sm:$0xff]
        %v428 = vld [vmem:[%s425 + $0x10] sm:$0xff]
        %v429 = vld [vmem:[%s425 + $0x18] sm:$0xff]
        %v430 = vld [vmem:[%s425 + $0x20] sm:$0xff]
        %v431 = vld [vmem:[%s425 + $0x28] sm:$0xff]
        %v432 = vld [vmem:[%s425 + $0x30] sm:$0xff]
        %v433 = vld [vmem:[%s425 + $0x38] sm:$0xff]
        %v434 = vld [vmem:[%s425 + $0x40] sm:$0xff]
        %v436 = vsel %vm260, %v423, 0
        %v439 = vsel %vm260, %v424, 0
        %441 = vmatprep.subr.mxu0 0.0
        %442 = vmatpush1.msra.mxu0 0.0
        %443 = vmatprep.subr.mxu0 0.0
        %444 = vmatpush1.msra.mxu0 0.0
        %445 = vmatprep.subr.mxu0 0.0
        %446 = vmatpush1.msra.mxu0 0.0
        %447 = vmatprep.subr.mxu0 0.0
        %448 = vmatpush1.msra.mxu0 0.0
        %449 = vmatprep.subr.mxu0 0.0
        %450 = vmatpush1.msra.mxu0 0.0
        %451 = vmatprep.subr.mxu0 0.0
        %452 = vmatpush1.msra.mxu0 0.0
        %453 = vmatprep.subr.mxu0 0.0
        %454 = vmatpush1.msra.mxu0 0.0
        %455 = vmatprep.subr.mxu0 0.0
        %456 = vmatpush1.msra.mxu0 %v434
        %457 = vmatprep.subr.mxu0 0.0
        %458 = vmatpush1.msra.mxu0 %v433
        %459 = vmatprep.subr.mxu0 0.0
        %460 = vmatpush1.msra.mxu0 %v432
        %461 = vmatprep.subr.mxu0 0.0
        %462 = vmatpush1.msra.mxu0 %v431
        %463 = vmatprep.subr.mxu0 0.0
        %464 = vmatpush1.msra.mxu0 %v430
        %465 = vmatprep.subr.mxu0 0.0
        %466 = vmatpush1.msra.mxu0 %v429
        %467 = vmatprep.subr.mxu0 0.0
        %468 = vmatpush1.msra.mxu0 %v428
        %469 = vmatprep.subr.mxu0 0.0
        %470 = vmatpush1.msra.mxu0 %v427
        %471 = vmatprep.subr.mxu0 0.0
        %472 = vmatpush1.msra.mxu0 %v426
        %473 = vmatprep.subr.mxu0 0.0
        %474 = vmatpush2.msra.mxu0 0.0
        %475 = vmatprep.subr.mxu0 0.0
        %476 = vmatpush2.msra.mxu0 0.0
        %477 = vmatprep.subr.mxu0 0.0
        %478 = vmatpush2.msra.mxu0 0.0
        %479 = vmatprep.subr.mxu0 0.0
        %480 = vmatpush2.msra.mxu0 0.0
        %481 = vmatprep.subr.mxu0 0.0
        %482 = vmatpush2.msra.mxu0 0.0
        %483 = vmatprep.subr.mxu0 0.0
        %484 = vmatpush2.msra.mxu0 0.0
        %485 = vmatprep.subr.mxu0 0.0
        %486 = vmatpush2.msra.mxu0 0.0
        %487 = vmatprep.subr.mxu0 0.0
        %488 = vmatpush2.msra.mxu0 0.0
        %489 = vmatprep.subr.mxu0 0.0
        %490 = vmatpush2.msra.mxu0 0.0
        %491 = vmatprep.subr.mxu0 0.0
        %492 = vmatpush2.msra.mxu0 0.0
        %493 = vmatprep.subr.mxu0 0.0
        %494 = vmatpush2.msra.mxu0 0.0
        %495 = vmatprep.subr.mxu0 0.0
        %496 = vmatpush2.msra.mxu0 0.0
        %497 = vmatprep.subr.mxu0 0.0
        %498 = vmatpush2.msra.mxu0 0.0
        %499 = vmatprep.subr.mxu0 0.0
        %500 = vmatpush2.msra.mxu0 0.0
        %501 = vmatprep.subr.mxu0 0.0
        %502 = vmatpush2.msra.mxu0 0.0
        %503 = vmatprep.subr.mxu0 0.0
        %504 = vmatpush2.msra.mxu0 0.0
        %505 = vmatprep.mubr.f32.mxu0 0.0
        %506 = vmatmul.mubr.f32.gmra.mxu0 %v436
        %v507 = vpop.f32.mrf.mxu0
        %v508 = vadd.f32 0.0, %v507
        %v509 = vpop.f32.mrf.mxu0
        %510 = vmatprep.mubr.f32.mxu0 0.0
        %511 = vmatmul.mubr.f32.gmra.mxu0 %v439
        %v512 = vpop.f32.mrf.mxu0
        %v513 = vadd.f32 0.0, %v512
        %v514 = vpop.f32.mrf.mxu0
        %515 = vdwg.mxu0
        %v516 = vadd.f32 %v415, %v508
        %v517 = vadd.f32 %v420, %v513
        %v518 = vld [vmem:[%s2] sm:$0x1]
        %v520 = vlaneseq
        %v521 = vshrl.u32 %v520, 7
        %v522 = vsub.s32 0, %v521
        %v523 = vrot.slane %v518, %v522
        %v525 = vadd.f32 %v516, %v523
        %v526 = vadd.f32 %v517, %v523
        %v527 = vmax.f32 %v525, 0.0
        %v528 = vmax.f32 %v526, 0.0
        %529 = vst [vmem:[#allocation2] sm:$0xff] %v527
        %530 = vst [vmem:[#allocation2 + $0x8] sm:$0xff] %v528
        %v531 = vld [vmem:[%s4] sm:$0x1]
        %v532 = vld [vmem:[#allocation2] sm:$0x1]
        %v533 = vld [vmem:[#allocation3] sm:$0xff]
        %v534 = vld [vmem:[#allocation3 + $0x8] sm:$0xff]
        %v535 = vld [vmem:[#allocation3 + $0x10] sm:$0xff]
        %v536 = vld [vmem:[#allocation3 + $0x18] sm:$0xff]
        %v537 = vld [vmem:[#allocation3 + $0x20] sm:$0xff]
        %v538 = vld [vmem:[#allocation3 + $0x28] sm:$0xff]
        %v539 = vld [vmem:[#allocation3 + $0x30] sm:$0xff]
        %v540 = vld [vmem:[#allocation3 + $0x38] sm:$0xff]
        %v541 = vld [vmem:[#allocation3 + $0x40] sm:$0xff]
        %v542 = vld [vmem:[#allocation3 + $0x48] sm:$0xff]
        %v543 = vld [vmem:[#allocation3 + $0x50] sm:$0xff]
        %v544 = vld [vmem:[#allocation3 + $0x58] sm:$0xff]
        %v545 = vld [vmem:[#allocation3 + $0x60] sm:$0xff]
        %v546 = vld [vmem:[#allocation3 + $0x68] sm:$0xff]
        %v547 = vld [vmem:[#allocation3 + $0x70] sm:$0xff]
        %v548 = vld [vmem:[#allocation3 + $0x78] sm:$0xff]
        %549 = vmatprep.subr.mxu0 0.0
        %550 = vmatpush1.msra.mxu0 %v548
        %551 = vmatprep.subr.mxu0 0.0
        %552 = vmatpush1.msra.mxu0 %v547
        %553 = vmatprep.subr.mxu0 0.0
        %554 = vmatpush1.msra.mxu0 %v546
        %555 = vmatprep.subr.mxu0 0.0
        %556 = vmatpush1.msra.mxu0 %v545
        %557 = vmatprep.subr.mxu0 0.0
        %558 = vmatpush1.msra.mxu0 %v544
        %559 = vmatprep.subr.mxu0 0.0
        %560 = vmatpush1.msra.mxu0 %v543
        %561 = vmatprep.subr.mxu0 0.0
        %562 = vmatpush1.msra.mxu0 %v542
        %563 = vmatprep.subr.mxu0 0.0
        %564 = vmatpush1.msra.mxu0 %v541
        %565 = vmatprep.subr.mxu0 0.0
        %566 = vmatpush1.msra.mxu0 %v540
        %567 = vmatprep.subr.mxu0 0.0
        %568 = vmatpush1.msra.mxu0 %v539
        %569 = vmatprep.subr.mxu0 0.0
        %570 = vmatpush1.msra.mxu0 %v538
        %571 = vmatprep.subr.mxu0 0.0
        %572 = vmatpush1.msra.mxu0 %v537
        %573 = vmatprep.subr.mxu0 0.0
        %574 = vmatpush1.msra.mxu0 %v536
        %575 = vmatprep.subr.mxu0 0.0
        %576 = vmatpush1.msra.mxu0 %v535
        %577 = vmatprep.subr.mxu0 0.0
        %578 = vmatpush1.msra.mxu0 %v534
        %579 = vmatprep.subr.mxu0 0.0
        %580 = vmatpush1.msra.mxu0 %v533
        %581 = vmatprep.subr.mxu0 0.0
        %582 = vmatpush2.msra.mxu0 0.0
        %583 = vmatprep.subr.mxu0 0.0
        %584 = vmatpush2.msra.mxu0 0.0
        %585 = vmatprep.subr.mxu0 0.0
        %586 = vmatpush2.msra.mxu0 0.0
        %587 = vmatprep.subr.mxu0 0.0
        %588 = vmatpush2.msra.mxu0 0.0
        %589 = vmatprep.subr.mxu0 0.0
        %590 = vmatpush2.msra.mxu0 0.0
        %591 = vmatprep.subr.mxu0 0.0
        %592 = vmatpush2.msra.mxu0 0.0
        %593 = vmatprep.subr.mxu0 0.0
        %594 = vmatpush2.msra.mxu0 0.0
        %595 = vmatprep.subr.mxu0 0.0
        %596 = vmatpush2.msra.mxu0 0.0
        %597 = vmatprep.subr.mxu0 0.0
        %598 = vmatpush2.msra.mxu0 0.0
        %599 = vmatprep.subr.mxu0 0.0
        %600 = vmatpush2.msra.mxu0 0.0
        %601 = vmatprep.subr.mxu0 0.0
        %602 = vmatpush2.msra.mxu0 0.0
        %603 = vmatprep.subr.mxu0 0.0
        %604 = vmatpush2.msra.mxu0 0.0
        %605 = vmatprep.subr.mxu0 0.0
        %606 = vmatpush2.msra.mxu0 0.0
        %607 = vmatprep.subr.mxu0 0.0
        %608 = vmatpush2.msra.mxu0 0.0
        %609 = vmatprep.subr.mxu0 0.0
        %610 = vmatpush2.msra.mxu0 0.0
        %611 = vmatprep.subr.mxu0 0.0
        %612 = vmatpush2.msra.mxu0 0.0
        %613 = vmatprep.mubr.f32.mxu0 0.0
        %614 = vmatmul.mubr.f32.gmra.mxu0 %v532
        %v615 = vpop.f32.mrf.mxu0
        %v616 = vadd.f32 0.0, %v615
        %v617 = vpop.f32.mrf.mxu0
        %618 = vdwg.mxu0
        %v619 = vadd.f32 %v531, %v616
        %v620 = vld [vmem:[#allocation2 + $0x1] sm:$0x1]
        %s621 = scalar_lea.vmem [#allocation3], 128
        %v622 = vld [vmem:[%s621] sm:$0xff]
        %v623 = vld [vmem:[%s621 + $0x8] sm:$0xff]
        %v624 = vld [vmem:[%s621 + $0x10] sm:$0xff]
        %v625 = vld [vmem:[%s621 + $0x18] sm:$0xff]
        %v626 = vld [vmem:[%s621 + $0x20] sm:$0xff]
        %v627 = vld [vmem:[%s621 + $0x28] sm:$0xff]
        %v628 = vld [vmem:[%s621 + $0x30] sm:$0xff]
        %v629 = vld [vmem:[%s621 + $0x38] sm:$0xff]
        %v630 = vld [vmem:[%s621 + $0x40] sm:$0xff]
        %v631 = vld [vmem:[%s621 + $0x48] sm:$0xff]
        %v632 = vld [vmem:[%s621 + $0x50] sm:$0xff]
        %v633 = vld [vmem:[%s621 + $0x58] sm:$0xff]
        %v634 = vld [vmem:[%s621 + $0x60] sm:$0xff]
        %v635 = vld [vmem:[%s621 + $0x68] sm:$0xff]
        %v636 = vld [vmem:[%s621 + $0x70] sm:$0xff]
        %v637 = vld [vmem:[%s621 + $0x78] sm:$0xff]
        %638 = vmatprep.subr.mxu0 0.0
        %639 = vmatpush1.msra.mxu0 %v637
        %640 = vmatprep.subr.mxu0 0.0
        %641 = vmatpush1.msra.mxu0 %v636
        %642 = vmatprep.subr.mxu0 0.0
        %643 = vmatpush1.msra.mxu0 %v635
        %644 = vmatprep.subr.mxu0 0.0
        %645 = vmatpush1.msra.mxu0 %v634
        %646 = vmatprep.subr.mxu0 0.0
        %647 = vmatpush1.msra.mxu0 %v633
        %648 = vmatprep.subr.mxu0 0.0
        %649 = vmatpush1.msra.mxu0 %v632
        %650 = vmatprep.subr.mxu0 0.0
        %651 = vmatpush1.msra.mxu0 %v631
        %652 = vmatprep.subr.mxu0 0.0
        %653 = vmatpush1.msra.mxu0 %v630
        %654 = vmatprep.subr.mxu0 0.0
        %655 = vmatpush1.msra.mxu0 %v629
        %656 = vmatprep.subr.mxu0 0.0
        %657 = vmatpush1.msra.mxu0 %v628
        %658 = vmatprep.subr.mxu0 0.0
        %659 = vmatpush1.msra.mxu0 %v627
        %660 = vmatprep.subr.mxu0 0.0
        %661 = vmatpush1.msra.mxu0 %v626
        %662 = vmatprep.subr.mxu0 0.0
        %663 = vmatpush1.msra.mxu0 %v625
        %664 = vmatprep.subr.mxu0 0.0
        %665 = vmatpush1.msra.mxu0 %v624
        %666 = vmatprep.subr.mxu0 0.0
        %667 = vmatpush1.msra.mxu0 %v623
        %668 = vmatprep.subr.mxu0 0.0
        %669 = vmatpush1.msra.mxu0 %v622
        %670 = vmatprep.subr.mxu0 0.0
        %671 = vmatpush2.msra.mxu0 0.0
        %672 = vmatprep.subr.mxu0 0.0
        %673 = vmatpush2.msra.mxu0 0.0
        %674 = vmatprep.subr.mxu0 0.0
        %675 = vmatpush2.msra.mxu0 0.0
        %676 = vmatprep.subr.mxu0 0.0
        %677 = vmatpush2.msra.mxu0 0.0
        %678 = vmatprep.subr.mxu0 0.0
        %679 = vmatpush2.msra.mxu0 0.0
        %680 = vmatprep.subr.mxu0 0.0
        %681 = vmatpush2.msra.mxu0 0.0
        %682 = vmatprep.subr.mxu0 0.0
        %683 = vmatpush2.msra.mxu0 0.0
        %684 = vmatprep.subr.mxu0 0.0
        %685 = vmatpush2.msra.mxu0 0.0
        %686 = vmatprep.subr.mxu0 0.0
        %687 = vmatpush2.msra.mxu0 0.0
        %688 = vmatprep.subr.mxu0 0.0
        %689 = vmatpush2.msra.mxu0 0.0
        %690 = vmatprep.subr.mxu0 0.0
        %691 = vmatpush2.msra.mxu0 0.0
        %692 = vmatprep.subr.mxu0 0.0
        %693 = vmatpush2.msra.mxu0 0.0
        %694 = vmatprep.subr.mxu0 0.0
        %695 = vmatpush2.msra.mxu0 0.0
        %696 = vmatprep.subr.mxu0 0.0
        %697 = vmatpush2.msra.mxu0 0.0
        %698 = vmatprep.subr.mxu0 0.0
        %699 = vmatpush2.msra.mxu0 0.0
        %700 = vmatprep.subr.mxu0 0.0
        %701 = vmatpush2.msra.mxu0 0.0
        %702 = vmatprep.mubr.f32.mxu0 0.0
        %703 = vmatmul.mubr.f32.gmra.mxu0 %v620
        %v704 = vpop.f32.mrf.mxu0
        %v705 = vadd.f32 0.0, %v704
        %v706 = vpop.f32.mrf.mxu0
        %707 = vdwg.mxu0
        %v708 = vadd.f32 %v619, %v705
        %v709 = vld [vmem:[#allocation2 + $0x2] sm:$0x1]
        %s710 = scalar_lea.vmem [#allocation3], 256
        %v711 = vld [vmem:[%s710] sm:$0xff]
        %v712 = vld [vmem:[%s710 + $0x8] sm:$0xff]
        %v713 = vld [vmem:[%s710 + $0x10] sm:$0xff]
        %v714 = vld [vmem:[%s710 + $0x18] sm:$0xff]
        %v715 = vld [vmem:[%s710 + $0x20] sm:$0xff]
        %v716 = vld [vmem:[%s710 + $0x28] sm:$0xff]
        %v717 = vld [vmem:[%s710 + $0x30] sm:$0xff]
        %v718 = vld [vmem:[%s710 + $0x38] sm:$0xff]
        %v719 = vld [vmem:[%s710 + $0x40] sm:$0xff]
        %v720 = vld [vmem:[%s710 + $0x48] sm:$0xff]
        %v721 = vld [vmem:[%s710 + $0x50] sm:$0xff]
        %v722 = vld [vmem:[%s710 + $0x58] sm:$0xff]
        %v723 = vld [vmem:[%s710 + $0x60] sm:$0xff]
        %v724 = vld [vmem:[%s710 + $0x68] sm:$0xff]
        %v725 = vld [vmem:[%s710 + $0x70] sm:$0xff]
        %v726 = vld [vmem:[%s710 + $0x78] sm:$0xff]
        %727 = vmatprep.subr.mxu0 0.0
        %728 = vmatpush1.msra.mxu0 %v726
        %729 = vmatprep.subr.mxu0 0.0
        %730 = vmatpush1.msra.mxu0 %v725
        %731 = vmatprep.subr.mxu0 0.0
        %732 = vmatpush1.msra.mxu0 %v724
        %733 = vmatprep.subr.mxu0 0.0
        %734 = vmatpush1.msra.mxu0 %v723
        %735 = vmatprep.subr.mxu0 0.0
        %736 = vmatpush1.msra.mxu0 %v722
        %737 = vmatprep.subr.mxu0 0.0
        %738 = vmatpush1.msra.mxu0 %v721
        %739 = vmatprep.subr.mxu0 0.0
        %740 = vmatpush1.msra.mxu0 %v720
        %741 = vmatprep.subr.mxu0 0.0
        %742 = vmatpush1.msra.mxu0 %v719
        %743 = vmatprep.subr.mxu0 0.0
        %744 = vmatpush1.msra.mxu0 %v718
        %745 = vmatprep.subr.mxu0 0.0
        %746 = vmatpush1.msra.mxu0 %v717
        %747 = vmatprep.subr.mxu0 0.0
        %748 = vmatpush1.msra.mxu0 %v716
        %749 = vmatprep.subr.mxu0 0.0
        %750 = vmatpush1.msra.mxu0 %v715
        %751 = vmatprep.subr.mxu0 0.0
        %752 = vmatpush1.msra.mxu0 %v714
        %753 = vmatprep.subr.mxu0 0.0
        %754 = vmatpush1.msra.mxu0 %v713
        %755 = vmatprep.subr.mxu0 0.0
        %756 = vmatpush1.msra.mxu0 %v712
        %757 = vmatprep.subr.mxu0 0.0
        %758 = vmatpush1.msra.mxu0 %v711
        %759 = vmatprep.subr.mxu0 0.0
        %760 = vmatpush2.msra.mxu0 0.0
        %761 = vmatprep.subr.mxu0 0.0
        %762 = vmatpush2.msra.mxu0 0.0
        %763 = vmatprep.subr.mxu0 0.0
        %764 = vmatpush2.msra.mxu0 0.0
        %765 = vmatprep.subr.mxu0 0.0
        %766 = vmatpush2.msra.mxu0 0.0
        %767 = vmatprep.subr.mxu0 0.0
        %768 = vmatpush2.msra.mxu0 0.0
        %769 = vmatprep.subr.mxu0 0.0
        %770 = vmatpush2.msra.mxu0 0.0
        %771 = vmatprep.subr.mxu0 0.0
        %772 = vmatpush2.msra.mxu0 0.0
        %773 = vmatprep.subr.mxu0 0.0
        %774 = vmatpush2.msra.mxu0 0.0
        %775 = vmatprep.subr.mxu0 0.0
        %776 = vmatpush2.msra.mxu0 0.0
        %777 = vmatprep.subr.mxu0 0.0
        %778 = vmatpush2.msra.mxu0 0.0
        %779 = vmatprep.subr.mxu0 0.0
        %780 = vmatpush2.msra.mxu0 0.0
        %781 = vmatprep.subr.mxu0 0.0
        %782 = vmatpush2.msra.mxu0 0.0
        %783 = vmatprep.subr.mxu0 0.0
        %784 = vmatpush2.msra.mxu0 0.0
        %785 = vmatprep.subr.mxu0 0.0
        %786 = vmatpush2.msra.mxu0 0.0
        %787 = vmatprep.subr.mxu0 0.0
        %788 = vmatpush2.msra.mxu0 0.0
        %789 = vmatprep.subr.mxu0 0.0
        %790 = vmatpush2.msra.mxu0 0.0
        %791 = vmatprep.mubr.f32.mxu0 0.0
        %792 = vmatmul.mubr.f32.gmra.mxu0 %v709
        %v793 = vpop.f32.mrf.mxu0
        %v794 = vadd.f32 0.0, %v793
        %v795 = vpop.f32.mrf.mxu0
        %796 = vdwg.mxu0
        %v797 = vadd.f32 %v708, %v794
        %v798 = vld [vmem:[#allocation2 + $0x3] sm:$0x1]
        %s799 = scalar_lea.vmem [#allocation3], 384
        %v800 = vld [vmem:[%s799] sm:$0xff]
        %v801 = vld [vmem:[%s799 + $0x8] sm:$0xff]
        %v802 = vld [vmem:[%s799 + $0x10] sm:$0xff]
        %v803 = vld [vmem:[%s799 + $0x18] sm:$0xff]
        %v804 = vld [vmem:[%s799 + $0x20] sm:$0xff]
        %v805 = vld [vmem:[%s799 + $0x28] sm:$0xff]
        %v806 = vld [vmem:[%s799 + $0x30] sm:$0xff]
        %v807 = vld [vmem:[%s799 + $0x38] sm:$0xff]
        %v808 = vld [vmem:[%s799 + $0x40] sm:$0xff]
        %v809 = vld [vmem:[%s799 + $0x48] sm:$0xff]
        %v810 = vld [vmem:[%s799 + $0x50] sm:$0xff]
        %v811 = vld [vmem:[%s799 + $0x58] sm:$0xff]
        %v812 = vld [vmem:[%s799 + $0x60] sm:$0xff]
        %v813 = vld [vmem:[%s799 + $0x68] sm:$0xff]
        %v814 = vld [vmem:[%s799 + $0x70] sm:$0xff]
        %v815 = vld [vmem:[%s799 + $0x78] sm:$0xff]
        %816 = vmatprep.subr.mxu0 0.0
        %817 = vmatpush1.msra.mxu0 %v815
        %818 = vmatprep.subr.mxu0 0.0
        %819 = vmatpush1.msra.mxu0 %v814
        %820 = vmatprep.subr.mxu0 0.0
        %821 = vmatpush1.msra.mxu0 %v813
        %822 = vmatprep.subr.mxu0 0.0
        %823 = vmatpush1.msra.mxu0 %v812
        %824 = vmatprep.subr.mxu0 0.0
        %825 = vmatpush1.msra.mxu0 %v811
        %826 = vmatprep.subr.mxu0 0.0
        %827 = vmatpush1.msra.mxu0 %v810
        %828 = vmatprep.subr.mxu0 0.0
        %829 = vmatpush1.msra.mxu0 %v809
        %830 = vmatprep.subr.mxu0 0.0
        %831 = vmatpush1.msra.mxu0 %v808
        %832 = vmatprep.subr.mxu0 0.0
        %833 = vmatpush1.msra.mxu0 %v807
        %834 = vmatprep.subr.mxu0 0.0
        %835 = vmatpush1.msra.mxu0 %v806
        %836 = vmatprep.subr.mxu0 0.0
        %837 = vmatpush1.msra.mxu0 %v805
        %838 = vmatprep.subr.mxu0 0.0
        %839 = vmatpush1.msra.mxu0 %v804
        %840 = vmatprep.subr.mxu0 0.0
        %841 = vmatpush1.msra.mxu0 %v803
        %842 = vmatprep.subr.mxu0 0.0
        %843 = vmatpush1.msra.mxu0 %v802
        %844 = vmatprep.subr.mxu0 0.0
        %845 = vmatpush1.msra.mxu0 %v801
        %846 = vmatprep.subr.mxu0 0.0
        %847 = vmatpush1.msra.mxu0 %v800
        %848 = vmatprep.subr.mxu0 0.0
        %849 = vmatpush2.msra.mxu0 0.0
        %850 = vmatprep.subr.mxu0 0.0
        %851 = vmatpush2.msra.mxu0 0.0
        %852 = vmatprep.subr.mxu0 0.0
        %853 = vmatpush2.msra.mxu0 0.0
        %854 = vmatprep.subr.mxu0 0.0
        %855 = vmatpush2.msra.mxu0 0.0
        %856 = vmatprep.subr.mxu0 0.0
        %857 = vmatpush2.msra.mxu0 0.0
        %858 = vmatprep.subr.mxu0 0.0
        %859 = vmatpush2.msra.mxu0 0.0
        %860 = vmatprep.subr.mxu0 0.0
        %861 = vmatpush2.msra.mxu0 0.0
        %862 = vmatprep.subr.mxu0 0.0
        %863 = vmatpush2.msra.mxu0 0.0
        %864 = vmatprep.subr.mxu0 0.0
        %865 = vmatpush2.msra.mxu0 0.0
        %866 = vmatprep.subr.mxu0 0.0
        %867 = vmatpush2.msra.mxu0 0.0
        %868 = vmatprep.subr.mxu0 0.0
        %869 = vmatpush2.msra.mxu0 0.0
        %870 = vmatprep.subr.mxu0 0.0
        %871 = vmatpush2.msra.mxu0 0.0
        %872 = vmatprep.subr.mxu0 0.0
        %873 = vmatpush2.msra.mxu0 0.0
        %874 = vmatprep.subr.mxu0 0.0
        %875 = vmatpush2.msra.mxu0 0.0
        %876 = vmatprep.subr.mxu0 0.0
        %877 = vmatpush2.msra.mxu0 0.0
        %878 = vmatprep.subr.mxu0 0.0
        %879 = vmatpush2.msra.mxu0 0.0
        %880 = vmatprep.mubr.f32.mxu0 0.0
        %881 = vmatmul.mubr.f32.gmra.mxu0 %v798
        %v882 = vpop.f32.mrf.mxu0
        %v883 = vadd.f32 0.0, %v882
        %v884 = vpop.f32.mrf.mxu0
        %885 = vdwg.mxu0
        %v886 = vadd.f32 %v797, %v883
        %v887 = vld [vmem:[#allocation2 + $0x4] sm:$0x1]
        %s888 = scalar_lea.vmem [#allocation3], 512
        %v889 = vld [vmem:[%s888] sm:$0xff]
        %v890 = vld [vmem:[%s888 + $0x8] sm:$0xff]
        %v891 = vld [vmem:[%s888 + $0x10] sm:$0xff]
        %v892 = vld [vmem:[%s888 + $0x18] sm:$0xff]
        %v893 = vld [vmem:[%s888 + $0x20] sm:$0xff]
        %v894 = vld [vmem:[%s888 + $0x28] sm:$0xff]
        %v895 = vld [vmem:[%s888 + $0x30] sm:$0xff]
        %v896 = vld [vmem:[%s888 + $0x38] sm:$0xff]
        %v897 = vld [vmem:[%s888 + $0x40] sm:$0xff]
        %v898 = vld [vmem:[%s888 + $0x48] sm:$0xff]
        %v899 = vld [vmem:[%s888 + $0x50] sm:$0xff]
        %v900 = vld [vmem:[%s888 + $0x58] sm:$0xff]
        %v901 = vld [vmem:[%s888 + $0x60] sm:$0xff]
        %v902 = vld [vmem:[%s888 + $0x68] sm:$0xff]
        %v903 = vld [vmem:[%s888 + $0x70] sm:$0xff]
        %v904 = vld [vmem:[%s888 + $0x78] sm:$0xff]
        %905 = vmatprep.subr.mxu0 0.0
        %906 = vmatpush1.msra.mxu0 %v904
        %907 = vmatprep.subr.mxu0 0.0
        %908 = vmatpush1.msra.mxu0 %v903
        %909 = vmatprep.subr.mxu0 0.0
        %910 = vmatpush1.msra.mxu0 %v902
        %911 = vmatprep.subr.mxu0 0.0
        %912 = vmatpush1.msra.mxu0 %v901
        %913 = vmatprep.subr.mxu0 0.0
        %914 = vmatpush1.msra.mxu0 %v900
        %915 = vmatprep.subr.mxu0 0.0
        %916 = vmatpush1.msra.mxu0 %v899
        %917 = vmatprep.subr.mxu0 0.0
        %918 = vmatpush1.msra.mxu0 %v898
        %919 = vmatprep.subr.mxu0 0.0
        %920 = vmatpush1.msra.mxu0 %v897
        %921 = vmatprep.subr.mxu0 0.0
        %922 = vmatpush1.msra.mxu0 %v896
        %923 = vmatprep.subr.mxu0 0.0
        %924 = vmatpush1.msra.mxu0 %v895
        %925 = vmatprep.subr.mxu0 0.0
        %926 = vmatpush1.msra.mxu0 %v894
        %927 = vmatprep.subr.mxu0 0.0
        %928 = vmatpush1.msra.mxu0 %v893
        %929 = vmatprep.subr.mxu0 0.0
        %930 = vmatpush1.msra.mxu0 %v892
        %931 = vmatprep.subr.mxu0 0.0
        %932 = vmatpush1.msra.mxu0 %v891
        %933 = vmatprep.subr.mxu0 0.0
        %934 = vmatpush1.msra.mxu0 %v890
        %935 = vmatprep.subr.mxu0 0.0
        %936 = vmatpush1.msra.mxu0 %v889
        %937 = vmatprep.subr.mxu0 0.0
        %938 = vmatpush2.msra.mxu0 0.0
        %939 = vmatprep.subr.mxu0 0.0
        %940 = vmatpush2.msra.mxu0 0.0
        %941 = vmatprep.subr.mxu0 0.0
        %942 = vmatpush2.msra.mxu0 0.0
        %943 = vmatprep.subr.mxu0 0.0
        %944 = vmatpush2.msra.mxu0 0.0
        %945 = vmatprep.subr.mxu0 0.0
        %946 = vmatpush2.msra.mxu0 0.0
        %947 = vmatprep.subr.mxu0 0.0
        %948 = vmatpush2.msra.mxu0 0.0
        %949 = vmatprep.subr.mxu0 0.0
        %950 = vmatpush2.msra.mxu0 0.0
        %951 = vmatprep.subr.mxu0 0.0
        %952 = vmatpush2.msra.mxu0 0.0
        %953 = vmatprep.subr.mxu0 0.0
        %954 = vmatpush2.msra.mxu0 0.0
        %955 = vmatprep.subr.mxu0 0.0
        %956 = vmatpush2.msra.mxu0 0.0
        %957 = vmatprep.subr.mxu0 0.0
        %958 = vmatpush2.msra.mxu0 0.0
        %959 = vmatprep.subr.mxu0 0.0
        %960 = vmatpush2.msra.mxu0 0.0
        %961 = vmatprep.subr.mxu0 0.0
        %962 = vmatpush2.msra.mxu0 0.0
        %963 = vmatprep.subr.mxu0 0.0
        %964 = vmatpush2.msra.mxu0 0.0
        %965 = vmatprep.subr.mxu0 0.0
        %966 = vmatpush2.msra.mxu0 0.0
        %967 = vmatprep.subr.mxu0 0.0
        %968 = vmatpush2.msra.mxu0 0.0
        %969 = vmatprep.mubr.f32.mxu0 0.0
        %970 = vmatmul.mubr.f32.gmra.mxu0 %v887
        %v971 = vpop.f32.mrf.mxu0
        %v972 = vadd.f32 0.0, %v971
        %v973 = vpop.f32.mrf.mxu0
        %974 = vdwg.mxu0
        %v975 = vadd.f32 %v886, %v972
        %v976 = vld [vmem:[#allocation2 + $0x5] sm:$0x1]
        %s977 = scalar_lea.vmem [#allocation3], 640
        %v978 = vld [vmem:[%s977] sm:$0xff]
        %v979 = vld [vmem:[%s977 + $0x8] sm:$0xff]
        %v980 = vld [vmem:[%s977 + $0x10] sm:$0xff]
        %v981 = vld [vmem:[%s977 + $0x18] sm:$0xff]
        %v982 = vld [vmem:[%s977 + $0x20] sm:$0xff]
        %v983 = vld [vmem:[%s977 + $0x28] sm:$0xff]
        %v984 = vld [vmem:[%s977 + $0x30] sm:$0xff]
        %v985 = vld [vmem:[%s977 + $0x38] sm:$0xff]
        %v986 = vld [vmem:[%s977 + $0x40] sm:$0xff]
        %v987 = vld [vmem:[%s977 + $0x48] sm:$0xff]
        %v988 = vld [vmem:[%s977 + $0x50] sm:$0xff]
        %v989 = vld [vmem:[%s977 + $0x58] sm:$0xff]
        %v990 = vld [vmem:[%s977 + $0x60] sm:$0xff]
        %v991 = vld [vmem:[%s977 + $0x68] sm:$0xff]
        %v992 = vld [vmem:[%s977 + $0x70] sm:$0xff]
        %v993 = vld [vmem:[%s977 + $0x78] sm:$0xff]
        %994 = vmatprep.subr.mxu0 0.0
        %995 = vmatpush1.msra.mxu0 %v993
        %996 = vmatprep.subr.mxu0 0.0
        %997 = vmatpush1.msra.mxu0 %v992
        %998 = vmatprep.subr.mxu0 0.0
        %999 = vmatpush1.msra.mxu0 %v991
        %1000 = vmatprep.subr.mxu0 0.0
        %1001 = vmatpush1.msra.mxu0 %v990
        %1002 = vmatprep.subr.mxu0 0.0
        %1003 = vmatpush1.msra.mxu0 %v989
        %1004 = vmatprep.subr.mxu0 0.0
        %1005 = vmatpush1.msra.mxu0 %v988
        %1006 = vmatprep.subr.mxu0 0.0
        %1007 = vmatpush1.msra.mxu0 %v987
        %1008 = vmatprep.subr.mxu0 0.0
        %1009 = vmatpush1.msra.mxu0 %v986
        %1010 = vmatprep.subr.mxu0 0.0
        %1011 = vmatpush1.msra.mxu0 %v985
        %1012 = vmatprep.subr.mxu0 0.0
        %1013 = vmatpush1.msra.mxu0 %v984
        %1014 = vmatprep.subr.mxu0 0.0
        %1015 = vmatpush1.msra.mxu0 %v983
        %1016 = vmatprep.subr.mxu0 0.0
        %1017 = vmatpush1.msra.mxu0 %v982
        %1018 = vmatprep.subr.mxu0 0.0
        %1019 = vmatpush1.msra.mxu0 %v981
        %1020 = vmatprep.subr.mxu0 0.0
        %1021 = vmatpush1.msra.mxu0 %v980
        %1022 = vmatprep.subr.mxu0 0.0
        %1023 = vmatpush1.msra.mxu0 %v979
        %1024 = vmatprep.subr.mxu0 0.0
        %1025 = vmatpush1.msra.mxu0 %v978
        %1026 = vmatprep.subr.mxu0 0.0
        %1027 = vmatpush2.msra.mxu0 0.0
        %1028 = vmatprep.subr.mxu0 0.0
        %1029 = vmatpush2.msra.mxu0 0.0
        %1030 = vmatprep.subr.mxu0 0.0
        %1031 = vmatpush2.msra.mxu0 0.0
        %1032 = vmatprep.subr.mxu0 0.0
        %1033 = vmatpush2.msra.mxu0 0.0
        %1034 = vmatprep.subr.mxu0 0.0
        %1035 = vmatpush2.msra.mxu0 0.0
        %1036 = vmatprep.subr.mxu0 0.0
        %1037 = vmatpush2.msra.mxu0 0.0
        %1038 = vmatprep.subr.mxu0 0.0
        %1039 = vmatpush2.msra.mxu0 0.0
        %1040 = vmatprep.subr.mxu0 0.0
        %1041 = vmatpush2.msra.mxu0 0.0
        %1042 = vmatprep.subr.mxu0 0.0
        %1043 = vmatpush2.msra.mxu0 0.0
        %1044 = vmatprep.subr.mxu0 0.0
        %1045 = vmatpush2.msra.mxu0 0.0
        %1046 = vmatprep.subr.mxu0 0.0
        %1047 = vmatpush2.msra.mxu0 0.0
        %1048 = vmatprep.subr.mxu0 0.0
        %1049 = vmatpush2.msra.mxu0 0.0
        %1050 = vmatprep.subr.mxu0 0.0
        %1051 = vmatpush2.msra.mxu0 0.0
        %1052 = vmatprep.subr.mxu0 0.0
        %1053 = vmatpush2.msra.mxu0 0.0
        %1054 = vmatprep.subr.mxu0 0.0
        %1055 = vmatpush2.msra.mxu0 0.0
        %1056 = vmatprep.subr.mxu0 0.0
        %1057 = vmatpush2.msra.mxu0 0.0
        %1058 = vmatprep.mubr.f32.mxu0 0.0
        %1059 = vmatmul.mubr.f32.gmra.mxu0 %v976
        %v1060 = vpop.f32.mrf.mxu0
        %v1061 = vadd.f32 0.0, %v1060
        %v1062 = vpop.f32.mrf.mxu0
        %1063 = vdwg.mxu0
        %v1064 = vadd.f32 %v975, %v1061
        %v1065 = vld [vmem:[#allocation2 + $0x6] sm:$0x1]
        %s1066 = scalar_lea.vmem [#allocation3], 768
        %v1067 = vld [vmem:[%s1066] sm:$0xff]
        %v1068 = vld [vmem:[%s1066 + $0x8] sm:$0xff]
        %v1069 = vld [vmem:[%s1066 + $0x10] sm:$0xff]
        %v1070 = vld [vmem:[%s1066 + $0x18] sm:$0xff]
        %v1071 = vld [vmem:[%s1066 + $0x20] sm:$0xff]
        %v1072 = vld [vmem:[%s1066 + $0x28] sm:$0xff]
        %v1073 = vld [vmem:[%s1066 + $0x30] sm:$0xff]
        %v1074 = vld [vmem:[%s1066 + $0x38] sm:$0xff]
        %v1075 = vld [vmem:[%s1066 + $0x40] sm:$0xff]
        %v1076 = vld [vmem:[%s1066 + $0x48] sm:$0xff]
        %v1077 = vld [vmem:[%s1066 + $0x50] sm:$0xff]
        %v1078 = vld [vmem:[%s1066 + $0x58] sm:$0xff]
        %v1079 = vld [vmem:[%s1066 + $0x60] sm:$0xff]
        %v1080 = vld [vmem:[%s1066 + $0x68] sm:$0xff]
        %v1081 = vld [vmem:[%s1066 + $0x70] sm:$0xff]
        %v1082 = vld [vmem:[%s1066 + $0x78] sm:$0xff]
        %1083 = vmatprep.subr.mxu0 0.0
        %1084 = vmatpush1.msra.mxu0 %v1082
        %1085 = vmatprep.subr.mxu0 0.0
        %1086 = vmatpush1.msra.mxu0 %v1081
        %1087 = vmatprep.subr.mxu0 0.0
        %1088 = vmatpush1.msra.mxu0 %v1080
        %1089 = vmatprep.subr.mxu0 0.0
        %1090 = vmatpush1.msra.mxu0 %v1079
        %1091 = vmatprep.subr.mxu0 0.0
        %1092 = vmatpush1.msra.mxu0 %v1078
        %1093 = vmatprep.subr.mxu0 0.0
        %1094 = vmatpush1.msra.mxu0 %v1077
        %1095 = vmatprep.subr.mxu0 0.0
        %1096 = vmatpush1.msra.mxu0 %v1076
        %1097 = vmatprep.subr.mxu0 0.0
        %1098 = vmatpush1.msra.mxu0 %v1075
        %1099 = vmatprep.subr.mxu0 0.0
        %1100 = vmatpush1.msra.mxu0 %v1074
        %1101 = vmatprep.subr.mxu0 0.0
        %1102 = vmatpush1.msra.mxu0 %v1073
        %1103 = vmatprep.subr.mxu0 0.0
        %1104 = vmatpush1.msra.mxu0 %v1072
        %1105 = vmatprep.subr.mxu0 0.0
        %1106 = vmatpush1.msra.mxu0 %v1071
        %1107 = vmatprep.subr.mxu0 0.0
        %1108 = vmatpush1.msra.mxu0 %v1070
        %1109 = vmatprep.subr.mxu0 0.0
        %1110 = vmatpush1.msra.mxu0 %v1069
        %1111 = vmatprep.subr.mxu0 0.0
        %1112 = vmatpush1.msra.mxu0 %v1068
        %1113 = vmatprep.subr.mxu0 0.0
        %1114 = vmatpush1.msra.mxu0 %v1067
        %1115 = vmatprep.subr.mxu0 0.0
        %1116 = vmatpush2.msra.mxu0 0.0
        %1117 = vmatprep.subr.mxu0 0.0
        %1118 = vmatpush2.msra.mxu0 0.0
        %1119 = vmatprep.subr.mxu0 0.0
        %1120 = vmatpush2.msra.mxu0 0.0
        %1121 = vmatprep.subr.mxu0 0.0
        %1122 = vmatpush2.msra.mxu0 0.0
        %1123 = vmatprep.subr.mxu0 0.0
        %1124 = vmatpush2.msra.mxu0 0.0
        %1125 = vmatprep.subr.mxu0 0.0
        %1126 = vmatpush2.msra.mxu0 0.0
        %1127 = vmatprep.subr.mxu0 0.0
        %1128 = vmatpush2.msra.mxu0 0.0
        %1129 = vmatprep.subr.mxu0 0.0
        %1130 = vmatpush2.msra.mxu0 0.0
        %1131 = vmatprep.subr.mxu0 0.0
        %1132 = vmatpush2.msra.mxu0 0.0
        %1133 = vmatprep.subr.mxu0 0.0
        %1134 = vmatpush2.msra.mxu0 0.0
        %1135 = vmatprep.subr.mxu0 0.0
        %1136 = vmatpush2.msra.mxu0 0.0
        %1137 = vmatprep.subr.mxu0 0.0
        %1138 = vmatpush2.msra.mxu0 0.0
        %1139 = vmatprep.subr.mxu0 0.0
        %1140 = vmatpush2.msra.mxu0 0.0
        %1141 = vmatprep.subr.mxu0 0.0
        %1142 = vmatpush2.msra.mxu0 0.0
        %1143 = vmatprep.subr.mxu0 0.0
        %1144 = vmatpush2.msra.mxu0 0.0
        %1145 = vmatprep.subr.mxu0 0.0
        %1146 = vmatpush2.msra.mxu0 0.0
        %1147 = vmatprep.mubr.f32.mxu0 0.0
        %1148 = vmatmul.mubr.f32.gmra.mxu0 %v1065
        %v1149 = vpop.f32.mrf.mxu0
        %v1150 = vadd.f32 0.0, %v1149
        %v1151 = vpop.f32.mrf.mxu0
        %1152 = vdwg.mxu0
        %v1153 = vadd.f32 %v1064, %v1150
        %v1154 = vld [vmem:[#allocation2 + $0x7] sm:$0x1]
        %s1155 = scalar_lea.vmem [#allocation3], 896
        %v1156 = vld [vmem:[%s1155] sm:$0xff]
        %v1157 = vld [vmem:[%s1155 + $0x8] sm:$0xff]
        %v1158 = vld [vmem:[%s1155 + $0x10] sm:$0xff]
        %v1159 = vld [vmem:[%s1155 + $0x18] sm:$0xff]
        %v1160 = vld [vmem:[%s1155 + $0x20] sm:$0xff]
        %v1161 = vld [vmem:[%s1155 + $0x28] sm:$0xff]
        %v1162 = vld [vmem:[%s1155 + $0x30] sm:$0xff]
        %v1163 = vld [vmem:[%s1155 + $0x38] sm:$0xff]
        %v1164 = vld [vmem:[%s1155 + $0x40] sm:$0xff]
        %v1165 = vld [vmem:[%s1155 + $0x48] sm:$0xff]
        %v1166 = vld [vmem:[%s1155 + $0x50] sm:$0xff]
        %v1167 = vld [vmem:[%s1155 + $0x58] sm:$0xff]
        %v1168 = vld [vmem:[%s1155 + $0x60] sm:$0xff]
        %v1169 = vld [vmem:[%s1155 + $0x68] sm:$0xff]
        %v1170 = vld [vmem:[%s1155 + $0x70] sm:$0xff]
        %v1171 = vld [vmem:[%s1155 + $0x78] sm:$0xff]
        %1172 = vmatprep.subr.mxu0 0.0
        %1173 = vmatpush1.msra.mxu0 %v1171
        %1174 = vmatprep.subr.mxu0 0.0
        %1175 = vmatpush1.msra.mxu0 %v1170
        %1176 = vmatprep.subr.mxu0 0.0
        %1177 = vmatpush1.msra.mxu0 %v1169
        %1178 = vmatprep.subr.mxu0 0.0
        %1179 = vmatpush1.msra.mxu0 %v1168
        %1180 = vmatprep.subr.mxu0 0.0
        %1181 = vmatpush1.msra.mxu0 %v1167
        %1182 = vmatprep.subr.mxu0 0.0
        %1183 = vmatpush1.msra.mxu0 %v1166
        %1184 = vmatprep.subr.mxu0 0.0
        %1185 = vmatpush1.msra.mxu0 %v1165
        %1186 = vmatprep.subr.mxu0 0.0
        %1187 = vmatpush1.msra.mxu0 %v1164
        %1188 = vmatprep.subr.mxu0 0.0
        %1189 = vmatpush1.msra.mxu0 %v1163
        %1190 = vmatprep.subr.mxu0 0.0
        %1191 = vmatpush1.msra.mxu0 %v1162
        %1192 = vmatprep.subr.mxu0 0.0
        %1193 = vmatpush1.msra.mxu0 %v1161
        %1194 = vmatprep.subr.mxu0 0.0
        %1195 = vmatpush1.msra.mxu0 %v1160
        %1196 = vmatprep.subr.mxu0 0.0
        %1197 = vmatpush1.msra.mxu0 %v1159
        %1198 = vmatprep.subr.mxu0 0.0
        %1199 = vmatpush1.msra.mxu0 %v1158
        %1200 = vmatprep.subr.mxu0 0.0
        %1201 = vmatpush1.msra.mxu0 %v1157
        %1202 = vmatprep.subr.mxu0 0.0
        %1203 = vmatpush1.msra.mxu0 %v1156
        %1204 = vmatprep.subr.mxu0 0.0
        %1205 = vmatpush2.msra.mxu0 0.0
        %1206 = vmatprep.subr.mxu0 0.0
        %1207 = vmatpush2.msra.mxu0 0.0
        %1208 = vmatprep.subr.mxu0 0.0
        %1209 = vmatpush2.msra.mxu0 0.0
        %1210 = vmatprep.subr.mxu0 0.0
        %1211 = vmatpush2.msra.mxu0 0.0
        %1212 = vmatprep.subr.mxu0 0.0
        %1213 = vmatpush2.msra.mxu0 0.0
        %1214 = vmatprep.subr.mxu0 0.0
        %1215 = vmatpush2.msra.mxu0 0.0
        %1216 = vmatprep.subr.mxu0 0.0
        %1217 = vmatpush2.msra.mxu0 0.0
        %1218 = vmatprep.subr.mxu0 0.0
        %1219 = vmatpush2.msra.mxu0 0.0
        %1220 = vmatprep.subr.mxu0 0.0
        %1221 = vmatpush2.msra.mxu0 0.0
        %1222 = vmatprep.subr.mxu0 0.0
        %1223 = vmatpush2.msra.mxu0 0.0
        %1224 = vmatprep.subr.mxu0 0.0
        %1225 = vmatpush2.msra.mxu0 0.0
        %1226 = vmatprep.subr.mxu0 0.0
        %1227 = vmatpush2.msra.mxu0 0.0
        %1228 = vmatprep.subr.mxu0 0.0
        %1229 = vmatpush2.msra.mxu0 0.0
        %1230 = vmatprep.subr.mxu0 0.0
        %1231 = vmatpush2.msra.mxu0 0.0
        %1232 = vmatprep.subr.mxu0 0.0
        %1233 = vmatpush2.msra.mxu0 0.0
        %1234 = vmatprep.subr.mxu0 0.0
        %1235 = vmatpush2.msra.mxu0 0.0
        %1236 = vmatprep.mubr.f32.mxu0 0.0
        %1237 = vmatmul.mubr.f32.gmra.mxu0 %v1154
        %v1238 = vpop.f32.mrf.mxu0
        %v1239 = vadd.f32 0.0, %v1238
        %v1240 = vpop.f32.mrf.mxu0
        %1241 = vdwg.mxu0
        %v1242 = vadd.f32 %v1153, %v1239
        %v1243 = vld [vmem:[#allocation2 + $0x8] sm:$0x1]
        %s1244 = scalar_lea.vmem [#allocation3], 1024
        %v1245 = vld [vmem:[%s1244] sm:$0xff]
        %v1246 = vld [vmem:[%s1244 + $0x8] sm:$0xff]
        %v1247 = vld [vmem:[%s1244 + $0x10] sm:$0xff]
        %v1248 = vld [vmem:[%s1244 + $0x18] sm:$0xff]
        %v1249 = vld [vmem:[%s1244 + $0x20] sm:$0xff]
        %v1250 = vld [vmem:[%s1244 + $0x28] sm:$0xff]
        %v1251 = vld [vmem:[%s1244 + $0x30] sm:$0xff]
        %v1252 = vld [vmem:[%s1244 + $0x38] sm:$0xff]
        %v1253 = vld [vmem:[%s1244 + $0x40] sm:$0xff]
        %v1254 = vld [vmem:[%s1244 + $0x48] sm:$0xff]
        %v1255 = vld [vmem:[%s1244 + $0x50] sm:$0xff]
        %v1256 = vld [vmem:[%s1244 + $0x58] sm:$0xff]
        %v1257 = vld [vmem:[%s1244 + $0x60] sm:$0xff]
        %v1258 = vld [vmem:[%s1244 + $0x68] sm:$0xff]
        %v1259 = vld [vmem:[%s1244 + $0x70] sm:$0xff]
        %v1260 = vld [vmem:[%s1244 + $0x78] sm:$0xff]
        %1261 = vmatprep.subr.mxu0 0.0
        %1262 = vmatpush1.msra.mxu0 %v1260
        %1263 = vmatprep.subr.mxu0 0.0
        %1264 = vmatpush1.msra.mxu0 %v1259
        %1265 = vmatprep.subr.mxu0 0.0
        %1266 = vmatpush1.msra.mxu0 %v1258
        %1267 = vmatprep.subr.mxu0 0.0
        %1268 = vmatpush1.msra.mxu0 %v1257
        %1269 = vmatprep.subr.mxu0 0.0
        %1270 = vmatpush1.msra.mxu0 %v1256
        %1271 = vmatprep.subr.mxu0 0.0
        %1272 = vmatpush1.msra.mxu0 %v1255
        %1273 = vmatprep.subr.mxu0 0.0
        %1274 = vmatpush1.msra.mxu0 %v1254
        %1275 = vmatprep.subr.mxu0 0.0
        %1276 = vmatpush1.msra.mxu0 %v1253
        %1277 = vmatprep.subr.mxu0 0.0
        %1278 = vmatpush1.msra.mxu0 %v1252
        %1279 = vmatprep.subr.mxu0 0.0
        %1280 = vmatpush1.msra.mxu0 %v1251
        %1281 = vmatprep.subr.mxu0 0.0
        %1282 = vmatpush1.msra.mxu0 %v1250
        %1283 = vmatprep.subr.mxu0 0.0
        %1284 = vmatpush1.msra.mxu0 %v1249
        %1285 = vmatprep.subr.mxu0 0.0
        %1286 = vmatpush1.msra.mxu0 %v1248
        %1287 = vmatprep.subr.mxu0 0.0
        %1288 = vmatpush1.msra.mxu0 %v1247
        %1289 = vmatprep.subr.mxu0 0.0
        %1290 = vmatpush1.msra.mxu0 %v1246
        %1291 = vmatprep.subr.mxu0 0.0
        %1292 = vmatpush1.msra.mxu0 %v1245
        %1293 = vmatprep.subr.mxu0 0.0
        %1294 = vmatpush2.msra.mxu0 0.0
        %1295 = vmatprep.subr.mxu0 0.0
        %1296 = vmatpush2.msra.mxu0 0.0
        %1297 = vmatprep.subr.mxu0 0.0
        %1298 = vmatpush2.msra.mxu0 0.0
        %1299 = vmatprep.subr.mxu0 0.0
        %1300 = vmatpush2.msra.mxu0 0.0
        %1301 = vmatprep.subr.mxu0 0.0
        %1302 = vmatpush2.msra.mxu0 0.0
        %1303 = vmatprep.subr.mxu0 0.0
        %1304 = vmatpush2.msra.mxu0 0.0
        %1305 = vmatprep.subr.mxu0 0.0
        %1306 = vmatpush2.msra.mxu0 0.0
        %1307 = vmatprep.subr.mxu0 0.0
        %1308 = vmatpush2.msra.mxu0 0.0
        %1309 = vmatprep.subr.mxu0 0.0
        %1310 = vmatpush2.msra.mxu0 0.0
        %1311 = vmatprep.subr.mxu0 0.0
        %1312 = vmatpush2.msra.mxu0 0.0
        %1313 = vmatprep.subr.mxu0 0.0
        %1314 = vmatpush2.msra.mxu0 0.0
        %1315 = vmatprep.subr.mxu0 0.0
        %1316 = vmatpush2.msra.mxu0 0.0
        %1317 = vmatprep.subr.mxu0 0.0
        %1318 = vmatpush2.msra.mxu0 0.0
        %1319 = vmatprep.subr.mxu0 0.0
        %1320 = vmatpush2.msra.mxu0 0.0
        %1321 = vmatprep.subr.mxu0 0.0
        %1322 = vmatpush2.msra.mxu0 0.0
        %1323 = vmatprep.subr.mxu0 0.0
        %1324 = vmatpush2.msra.mxu0 0.0
        %1325 = vmatprep.mubr.f32.mxu0 0.0
        %1326 = vmatmul.mubr.f32.gmra.mxu0 %v1243
        %v1327 = vpop.f32.mrf.mxu0
        %v1328 = vadd.f32 0.0, %v1327
        %v1329 = vpop.f32.mrf.mxu0
        %1330 = vdwg.mxu0
        %v1331 = vadd.f32 %v1242, %v1328
        %v1332 = vld [vmem:[#allocation2 + $0x9] sm:$0x1]
        %s1333 = scalar_lea.vmem [#allocation3], 1152
        %v1334 = vld [vmem:[%s1333] sm:$0xff]
        %v1335 = vld [vmem:[%s1333 + $0x8] sm:$0xff]
        %v1336 = vld [vmem:[%s1333 + $0x10] sm:$0xff]
        %v1337 = vld [vmem:[%s1333 + $0x18] sm:$0xff]
        %v1338 = vld [vmem:[%s1333 + $0x20] sm:$0xff]
        %v1339 = vld [vmem:[%s1333 + $0x28] sm:$0xff]
        %v1340 = vld [vmem:[%s1333 + $0x30] sm:$0xff]
        %v1341 = vld [vmem:[%s1333 + $0x38] sm:$0xff]
        %v1342 = vld [vmem:[%s1333 + $0x40] sm:$0xff]
        %v1343 = vld [vmem:[%s1333 + $0x48] sm:$0xff]
        %v1344 = vld [vmem:[%s1333 + $0x50] sm:$0xff]
        %v1345 = vld [vmem:[%s1333 + $0x58] sm:$0xff]
        %v1346 = vld [vmem:[%s1333 + $0x60] sm:$0xff]
        %v1347 = vld [vmem:[%s1333 + $0x68] sm:$0xff]
        %v1348 = vld [vmem:[%s1333 + $0x70] sm:$0xff]
        %v1349 = vld [vmem:[%s1333 + $0x78] sm:$0xff]
        %1350 = vmatprep.subr.mxu0 0.0
        %1351 = vmatpush1.msra.mxu0 %v1349
        %1352 = vmatprep.subr.mxu0 0.0
        %1353 = vmatpush1.msra.mxu0 %v1348
        %1354 = vmatprep.subr.mxu0 0.0
        %1355 = vmatpush1.msra.mxu0 %v1347
        %1356 = vmatprep.subr.mxu0 0.0
        %1357 = vmatpush1.msra.mxu0 %v1346
        %1358 = vmatprep.subr.mxu0 0.0
        %1359 = vmatpush1.msra.mxu0 %v1345
        %1360 = vmatprep.subr.mxu0 0.0
        %1361 = vmatpush1.msra.mxu0 %v1344
        %1362 = vmatprep.subr.mxu0 0.0
        %1363 = vmatpush1.msra.mxu0 %v1343
        %1364 = vmatprep.subr.mxu0 0.0
        %1365 = vmatpush1.msra.mxu0 %v1342
        %1366 = vmatprep.subr.mxu0 0.0
        %1367 = vmatpush1.msra.mxu0 %v1341
        %1368 = vmatprep.subr.mxu0 0.0
        %1369 = vmatpush1.msra.mxu0 %v1340
        %1370 = vmatprep.subr.mxu0 0.0
        %1371 = vmatpush1.msra.mxu0 %v1339
        %1372 = vmatprep.subr.mxu0 0.0
        %1373 = vmatpush1.msra.mxu0 %v1338
        %1374 = vmatprep.subr.mxu0 0.0
        %1375 = vmatpush1.msra.mxu0 %v1337
        %1376 = vmatprep.subr.mxu0 0.0
        %1377 = vmatpush1.msra.mxu0 %v1336
        %1378 = vmatprep.subr.mxu0 0.0
        %1379 = vmatpush1.msra.mxu0 %v1335
        %1380 = vmatprep.subr.mxu0 0.0
        %1381 = vmatpush1.msra.mxu0 %v1334
        %1382 = vmatprep.subr.mxu0 0.0
        %1383 = vmatpush2.msra.mxu0 0.0
        %1384 = vmatprep.subr.mxu0 0.0
        %1385 = vmatpush2.msra.mxu0 0.0
        %1386 = vmatprep.subr.mxu0 0.0
        %1387 = vmatpush2.msra.mxu0 0.0
        %1388 = vmatprep.subr.mxu0 0.0
        %1389 = vmatpush2.msra.mxu0 0.0
        %1390 = vmatprep.subr.mxu0 0.0
        %1391 = vmatpush2.msra.mxu0 0.0
        %1392 = vmatprep.subr.mxu0 0.0
        %1393 = vmatpush2.msra.mxu0 0.0
        %1394 = vmatprep.subr.mxu0 0.0
        %1395 = vmatpush2.msra.mxu0 0.0
        %1396 = vmatprep.subr.mxu0 0.0
        %1397 = vmatpush2.msra.mxu0 0.0
        %1398 = vmatprep.subr.mxu0 0.0
        %1399 = vmatpush2.msra.mxu0 0.0
        %1400 = vmatprep.subr.mxu0 0.0
        %1401 = vmatpush2.msra.mxu0 0.0
        %1402 = vmatprep.subr.mxu0 0.0
        %1403 = vmatpush2.msra.mxu0 0.0
        %1404 = vmatprep.subr.mxu0 0.0
        %1405 = vmatpush2.msra.mxu0 0.0
        %1406 = vmatprep.subr.mxu0 0.0
        %1407 = vmatpush2.msra.mxu0 0.0
        %1408 = vmatprep.subr.mxu0 0.0
        %1409 = vmatpush2.msra.mxu0 0.0
        %1410 = vmatprep.subr.mxu0 0.0
        %1411 = vmatpush2.msra.mxu0 0.0
        %1412 = vmatprep.subr.mxu0 0.0
        %1413 = vmatpush2.msra.mxu0 0.0
        %1414 = vmatprep.mubr.f32.mxu0 0.0
        %1415 = vmatmul.mubr.f32.gmra.mxu0 %v1332
        %v1416 = vpop.f32.mrf.mxu0
        %v1417 = vadd.f32 0.0, %v1416
        %v1418 = vpop.f32.mrf.mxu0
        %1419 = vdwg.mxu0
        %v1420 = vadd.f32 %v1331, %v1417
        %v1421 = vld [vmem:[#allocation2 + $0xa] sm:$0x1]
        %s1422 = scalar_lea.vmem [#allocation3], 1280
        %v1423 = vld [vmem:[%s1422] sm:$0xff]
        %v1424 = vld [vmem:[%s1422 + $0x8] sm:$0xff]
        %v1425 = vld [vmem:[%s1422 + $0x10] sm:$0xff]
        %v1426 = vld [vmem:[%s1422 + $0x18] sm:$0xff]
        %v1427 = vld [vmem:[%s1422 + $0x20] sm:$0xff]
        %v1428 = vld [vmem:[%s1422 + $0x28] sm:$0xff]
        %v1429 = vld [vmem:[%s1422 + $0x30] sm:$0xff]
        %v1430 = vld [vmem:[%s1422 + $0x38] sm:$0xff]
        %v1431 = vld [vmem:[%s1422 + $0x40] sm:$0xff]
        %v1432 = vld [vmem:[%s1422 + $0x48] sm:$0xff]
        %v1433 = vld [vmem:[%s1422 + $0x50] sm:$0xff]
        %v1434 = vld [vmem:[%s1422 + $0x58] sm:$0xff]
        %v1435 = vld [vmem:[%s1422 + $0x60] sm:$0xff]
        %v1436 = vld [vmem:[%s1422 + $0x68] sm:$0xff]
        %v1437 = vld [vmem:[%s1422 + $0x70] sm:$0xff]
        %v1438 = vld [vmem:[%s1422 + $0x78] sm:$0xff]
        %1439 = vmatprep.subr.mxu0 0.0
        %1440 = vmatpush1.msra.mxu0 %v1438
        %1441 = vmatprep.subr.mxu0 0.0
        %1442 = vmatpush1.msra.mxu0 %v1437
        %1443 = vmatprep.subr.mxu0 0.0
        %1444 = vmatpush1.msra.mxu0 %v1436
        %1445 = vmatprep.subr.mxu0 0.0
        %1446 = vmatpush1.msra.mxu0 %v1435
        %1447 = vmatprep.subr.mxu0 0.0
        %1448 = vmatpush1.msra.mxu0 %v1434
        %1449 = vmatprep.subr.mxu0 0.0
        %1450 = vmatpush1.msra.mxu0 %v1433
        %1451 = vmatprep.subr.mxu0 0.0
        %1452 = vmatpush1.msra.mxu0 %v1432
        %1453 = vmatprep.subr.mxu0 0.0
        %1454 = vmatpush1.msra.mxu0 %v1431
        %1455 = vmatprep.subr.mxu0 0.0
        %1456 = vmatpush1.msra.mxu0 %v1430
        %1457 = vmatprep.subr.mxu0 0.0
        %1458 = vmatpush1.msra.mxu0 %v1429
        %1459 = vmatprep.subr.mxu0 0.0
        %1460 = vmatpush1.msra.mxu0 %v1428
        %1461 = vmatprep.subr.mxu0 0.0
        %1462 = vmatpush1.msra.mxu0 %v1427
        %1463 = vmatprep.subr.mxu0 0.0
        %1464 = vmatpush1.msra.mxu0 %v1426
        %1465 = vmatprep.subr.mxu0 0.0
        %1466 = vmatpush1.msra.mxu0 %v1425
        %1467 = vmatprep.subr.mxu0 0.0
        %1468 = vmatpush1.msra.mxu0 %v1424
        %1469 = vmatprep.subr.mxu0 0.0
        %1470 = vmatpush1.msra.mxu0 %v1423
        %1471 = vmatprep.subr.mxu0 0.0
        %1472 = vmatpush2.msra.mxu0 0.0
        %1473 = vmatprep.subr.mxu0 0.0
        %1474 = vmatpush2.msra.mxu0 0.0
        %1475 = vmatprep.subr.mxu0 0.0
        %1476 = vmatpush2.msra.mxu0 0.0
        %1477 = vmatprep.subr.mxu0 0.0
        %1478 = vmatpush2.msra.mxu0 0.0
        %1479 = vmatprep.subr.mxu0 0.0
        %1480 = vmatpush2.msra.mxu0 0.0
        %1481 = vmatprep.subr.mxu0 0.0
        %1482 = vmatpush2.msra.mxu0 0.0
        %1483 = vmatprep.subr.mxu0 0.0
        %1484 = vmatpush2.msra.mxu0 0.0
        %1485 = vmatprep.subr.mxu0 0.0
        %1486 = vmatpush2.msra.mxu0 0.0
        %1487 = vmatprep.subr.mxu0 0.0
        %1488 = vmatpush2.msra.mxu0 0.0
        %1489 = vmatprep.subr.mxu0 0.0
        %1490 = vmatpush2.msra.mxu0 0.0
        %1491 = vmatprep.subr.mxu0 0.0
        %1492 = vmatpush2.msra.mxu0 0.0
        %1493 = vmatprep.subr.mxu0 0.0
        %1494 = vmatpush2.msra.mxu0 0.0
        %1495 = vmatprep.subr.mxu0 0.0
        %1496 = vmatpush2.msra.mxu0 0.0
        %1497 = vmatprep.subr.mxu0 0.0
        %1498 = vmatpush2.msra.mxu0 0.0
        %1499 = vmatprep.subr.mxu0 0.0
        %1500 = vmatpush2.msra.mxu0 0.0
        %1501 = vmatprep.subr.mxu0 0.0
        %1502 = vmatpush2.msra.mxu0 0.0
        %1503 = vmatprep.mubr.f32.mxu0 0.0
        %1504 = vmatmul.mubr.f32.gmra.mxu0 %v1421
        %v1505 = vpop.f32.mrf.mxu0
        %v1506 = vadd.f32 0.0, %v1505
        %v1507 = vpop.f32.mrf.mxu0
        %1508 = vdwg.mxu0
        %v1509 = vadd.f32 %v1420, %v1506
        %v1510 = vld [vmem:[#allocation2 + $0xb] sm:$0x1]
        %s1511 = scalar_lea.vmem [#allocation3], 1408
        %v1512 = vld [vmem:[%s1511] sm:$0xff]
        %v1513 = vld [vmem:[%s1511 + $0x8] sm:$0xff]
        %v1514 = vld [vmem:[%s1511 + $0x10] sm:$0xff]
        %v1515 = vld [vmem:[%s1511 + $0x18] sm:$0xff]
        %v1516 = vld [vmem:[%s1511 + $0x20] sm:$0xff]
        %v1517 = vld [vmem:[%s1511 + $0x28] sm:$0xff]
        %v1518 = vld [vmem:[%s1511 + $0x30] sm:$0xff]
        %v1519 = vld [vmem:[%s1511 + $0x38] sm:$0xff]
        %v1520 = vld [vmem:[%s1511 + $0x40] sm:$0xff]
        %v1521 = vld [vmem:[%s1511 + $0x48] sm:$0xff]
        %v1522 = vld [vmem:[%s1511 + $0x50] sm:$0xff]
        %v1523 = vld [vmem:[%s1511 + $0x58] sm:$0xff]
        %v1524 = vld [vmem:[%s1511 + $0x60] sm:$0xff]
        %v1525 = vld [vmem:[%s1511 + $0x68] sm:$0xff]
        %v1526 = vld [vmem:[%s1511 + $0x70] sm:$0xff]
        %v1527 = vld [vmem:[%s1511 + $0x78] sm:$0xff]
        %1528 = vmatprep.subr.mxu0 0.0
        %1529 = vmatpush1.msra.mxu0 %v1527
        %1530 = vmatprep.subr.mxu0 0.0
        %1531 = vmatpush1.msra.mxu0 %v1526
        %1532 = vmatprep.subr.mxu0 0.0
        %1533 = vmatpush1.msra.mxu0 %v1525
        %1534 = vmatprep.subr.mxu0 0.0
        %1535 = vmatpush1.msra.mxu0 %v1524
        %1536 = vmatprep.subr.mxu0 0.0
        %1537 = vmatpush1.msra.mxu0 %v1523
        %1538 = vmatprep.subr.mxu0 0.0
        %1539 = vmatpush1.msra.mxu0 %v1522
        %1540 = vmatprep.subr.mxu0 0.0
        %1541 = vmatpush1.msra.mxu0 %v1521
        %1542 = vmatprep.subr.mxu0 0.0
        %1543 = vmatpush1.msra.mxu0 %v1520
        %1544 = vmatprep.subr.mxu0 0.0
        %1545 = vmatpush1.msra.mxu0 %v1519
        %1546 = vmatprep.subr.mxu0 0.0
        %1547 = vmatpush1.msra.mxu0 %v1518
        %1548 = vmatprep.subr.mxu0 0.0
        %1549 = vmatpush1.msra.mxu0 %v1517
        %1550 = vmatprep.subr.mxu0 0.0
        %1551 = vmatpush1.msra.mxu0 %v1516
        %1552 = vmatprep.subr.mxu0 0.0
        %1553 = vmatpush1.msra.mxu0 %v1515
        %1554 = vmatprep.subr.mxu0 0.0
        %1555 = vmatpush1.msra.mxu0 %v1514
        %1556 = vmatprep.subr.mxu0 0.0
        %1557 = vmatpush1.msra.mxu0 %v1513
        %1558 = vmatprep.subr.mxu0 0.0
        %1559 = vmatpush1.msra.mxu0 %v1512
        %1560 = vmatprep.subr.mxu0 0.0
        %1561 = vmatpush2.msra.mxu0 0.0
        %1562 = vmatprep.subr.mxu0 0.0
        %1563 = vmatpush2.msra.mxu0 0.0
        %1564 = vmatprep.subr.mxu0 0.0
        %1565 = vmatpush2.msra.mxu0 0.0
        %1566 = vmatprep.subr.mxu0 0.0
        %1567 = vmatpush2.msra.mxu0 0.0
        %1568 = vmatprep.subr.mxu0 0.0
        %1569 = vmatpush2.msra.mxu0 0.0
        %1570 = vmatprep.subr.mxu0 0.0
        %1571 = vmatpush2.msra.mxu0 0.0
        %1572 = vmatprep.subr.mxu0 0.0
        %1573 = vmatpush2.msra.mxu0 0.0
        %1574 = vmatprep.subr.mxu0 0.0
        %1575 = vmatpush2.msra.mxu0 0.0
        %1576 = vmatprep.subr.mxu0 0.0
        %1577 = vmatpush2.msra.mxu0 0.0
        %1578 = vmatprep.subr.mxu0 0.0
        %1579 = vmatpush2.msra.mxu0 0.0
        %1580 = vmatprep.subr.mxu0 0.0
        %1581 = vmatpush2.msra.mxu0 0.0
        %1582 = vmatprep.subr.mxu0 0.0
        %1583 = vmatpush2.msra.mxu0 0.0
        %1584 = vmatprep.subr.mxu0 0.0
        %1585 = vmatpush2.msra.mxu0 0.0
        %1586 = vmatprep.subr.mxu0 0.0
        %1587 = vmatpush2.msra.mxu0 0.0
        %1588 = vmatprep.subr.mxu0 0.0
        %1589 = vmatpush2.msra.mxu0 0.0
        %1590 = vmatprep.subr.mxu0 0.0
        %1591 = vmatpush2.msra.mxu0 0.0
        %1592 = vmatprep.mubr.f32.mxu0 0.0
        %1593 = vmatmul.mubr.f32.gmra.mxu0 %v1510
        %v1594 = vpop.f32.mrf.mxu0
        %v1595 = vadd.f32 0.0, %v1594
        %v1596 = vpop.f32.mrf.mxu0
        %1597 = vdwg.mxu0
        %v1598 = vadd.f32 %v1509, %v1595
        %v1599 = vld [vmem:[#allocation2 + $0xc] sm:$0x1]
        %s1600 = scalar_lea.vmem [#allocation3], 1536
        %v1601 = vld [vmem:[%s1600] sm:$0xff]
        %v1602 = vld [vmem:[%s1600 + $0x8] sm:$0xff]
        %v1603 = vld [vmem:[%s1600 + $0x10] sm:$0xff]
        %v1604 = vld [vmem:[%s1600 + $0x18] sm:$0xff]
        %v1605 = vld [vmem:[%s1600 + $0x20] sm:$0xff]
        %v1606 = vld [vmem:[%s1600 + $0x28] sm:$0xff]
        %v1607 = vld [vmem:[%s1600 + $0x30] sm:$0xff]
        %v1608 = vld [vmem:[%s1600 + $0x38] sm:$0xff]
        %v1609 = vld [vmem:[%s1600 + $0x40] sm:$0xff]
        %v1610 = vld [vmem:[%s1600 + $0x48] sm:$0xff]
        %v1611 = vld [vmem:[%s1600 + $0x50] sm:$0xff]
        %v1612 = vld [vmem:[%s1600 + $0x58] sm:$0xff]
        %v1613 = vld [vmem:[%s1600 + $0x60] sm:$0xff]
        %v1614 = vld [vmem:[%s1600 + $0x68] sm:$0xff]
        %v1615 = vld [vmem:[%s1600 + $0x70] sm:$0xff]
        %v1616 = vld [vmem:[%s1600 + $0x78] sm:$0xff]
        %1617 = vmatprep.subr.mxu0 0.0
        %1618 = vmatpush1.msra.mxu0 %v1616
        %1619 = vmatprep.subr.mxu0 0.0
        %1620 = vmatpush1.msra.mxu0 %v1615
        %1621 = vmatprep.subr.mxu0 0.0
        %1622 = vmatpush1.msra.mxu0 %v1614
        %1623 = vmatprep.subr.mxu0 0.0
        %1624 = vmatpush1.msra.mxu0 %v1613
        %1625 = vmatprep.subr.mxu0 0.0
        %1626 = vmatpush1.msra.mxu0 %v1612
        %1627 = vmatprep.subr.mxu0 0.0
        %1628 = vmatpush1.msra.mxu0 %v1611
        %1629 = vmatprep.subr.mxu0 0.0
        %1630 = vmatpush1.msra.mxu0 %v1610
        %1631 = vmatprep.subr.mxu0 0.0
        %1632 = vmatpush1.msra.mxu0 %v1609
        %1633 = vmatprep.subr.mxu0 0.0
        %1634 = vmatpush1.msra.mxu0 %v1608
        %1635 = vmatprep.subr.mxu0 0.0
        %1636 = vmatpush1.msra.mxu0 %v1607
        %1637 = vmatprep.subr.mxu0 0.0
        %1638 = vmatpush1.msra.mxu0 %v1606
        %1639 = vmatprep.subr.mxu0 0.0
        %1640 = vmatpush1.msra.mxu0 %v1605
        %1641 = vmatprep.subr.mxu0 0.0
        %1642 = vmatpush1.msra.mxu0 %v1604
        %1643 = vmatprep.subr.mxu0 0.0
        %1644 = vmatpush1.msra.mxu0 %v1603
        %1645 = vmatprep.subr.mxu0 0.0
        %1646 = vmatpush1.msra.mxu0 %v1602
        %1647 = vmatprep.subr.mxu0 0.0
        %1648 = vmatpush1.msra.mxu0 %v1601
        %1649 = vmatprep.subr.mxu0 0.0
        %1650 = vmatpush2.msra.mxu0 0.0
        %1651 = vmatprep.subr.mxu0 0.0
        %1652 = vmatpush2.msra.mxu0 0.0
        %1653 = vmatprep.subr.mxu0 0.0
        %1654 = vmatpush2.msra.mxu0 0.0
        %1655 = vmatprep.subr.mxu0 0.0
        %1656 = vmatpush2.msra.mxu0 0.0
        %1657 = vmatprep.subr.mxu0 0.0
        %1658 = vmatpush2.msra.mxu0 0.0
        %1659 = vmatprep.subr.mxu0 0.0
        %1660 = vmatpush2.msra.mxu0 0.0
        %1661 = vmatprep.subr.mxu0 0.0
        %1662 = vmatpush2.msra.mxu0 0.0
        %1663 = vmatprep.subr.mxu0 0.0
        %1664 = vmatpush2.msra.mxu0 0.0
        %1665 = vmatprep.subr.mxu0 0.0
        %1666 = vmatpush2.msra.mxu0 0.0
        %1667 = vmatprep.subr.mxu0 0.0
        %1668 = vmatpush2.msra.mxu0 0.0
        %1669 = vmatprep.subr.mxu0 0.0
        %1670 = vmatpush2.msra.mxu0 0.0
        %1671 = vmatprep.subr.mxu0 0.0
        %1672 = vmatpush2.msra.mxu0 0.0
        %1673 = vmatprep.subr.mxu0 0.0
        %1674 = vmatpush2.msra.mxu0 0.0
        %1675 = vmatprep.subr.mxu0 0.0
        %1676 = vmatpush2.msra.mxu0 0.0
        %1677 = vmatprep.subr.mxu0 0.0
        %1678 = vmatpush2.msra.mxu0 0.0
        %1679 = vmatprep.subr.mxu0 0.0
        %1680 = vmatpush2.msra.mxu0 0.0
        %1681 = vmatprep.mubr.f32.mxu0 0.0
        %1682 = vmatmul.mubr.f32.gmra.mxu0 %v1599
        %v1683 = vpop.f32.mrf.mxu0
        %v1684 = vadd.f32 0.0, %v1683
        %v1685 = vpop.f32.mrf.mxu0
        %1686 = vdwg.mxu0
        %v1687 = vadd.f32 %v1598, %v1684
        %v1688 = vld [vmem:[#allocation2 + $0xd] sm:$0x1]
        %s1689 = scalar_lea.vmem [#allocation3], 1664
        %v1690 = vld [vmem:[%s1689] sm:$0xff]
        %v1691 = vld [vmem:[%s1689 + $0x8] sm:$0xff]
        %v1692 = vld [vmem:[%s1689 + $0x10] sm:$0xff]
        %v1693 = vld [vmem:[%s1689 + $0x18] sm:$0xff]
        %v1694 = vld [vmem:[%s1689 + $0x20] sm:$0xff]
        %v1695 = vld [vmem:[%s1689 + $0x28] sm:$0xff]
        %v1696 = vld [vmem:[%s1689 + $0x30] sm:$0xff]
        %v1697 = vld [vmem:[%s1689 + $0x38] sm:$0xff]
        %v1698 = vld [vmem:[%s1689 + $0x40] sm:$0xff]
        %v1699 = vld [vmem:[%s1689 + $0x48] sm:$0xff]
        %v1700 = vld [vmem:[%s1689 + $0x50] sm:$0xff]
        %v1701 = vld [vmem:[%s1689 + $0x58] sm:$0xff]
        %v1702 = vld [vmem:[%s1689 + $0x60] sm:$0xff]
        %v1703 = vld [vmem:[%s1689 + $0x68] sm:$0xff]
        %v1704 = vld [vmem:[%s1689 + $0x70] sm:$0xff]
        %v1705 = vld [vmem:[%s1689 + $0x78] sm:$0xff]
        %1706 = vmatprep.subr.mxu0 0.0
        %1707 = vmatpush1.msra.mxu0 %v1705
        %1708 = vmatprep.subr.mxu0 0.0
        %1709 = vmatpush1.msra.mxu0 %v1704
        %1710 = vmatprep.subr.mxu0 0.0
        %1711 = vmatpush1.msra.mxu0 %v1703
        %1712 = vmatprep.subr.mxu0 0.0
        %1713 = vmatpush1.msra.mxu0 %v1702
        %1714 = vmatprep.subr.mxu0 0.0
        %1715 = vmatpush1.msra.mxu0 %v1701
        %1716 = vmatprep.subr.mxu0 0.0
        %1717 = vmatpush1.msra.mxu0 %v1700
        %1718 = vmatprep.subr.mxu0 0.0
        %1719 = vmatpush1.msra.mxu0 %v1699
        %1720 = vmatprep.subr.mxu0 0.0
        %1721 = vmatpush1.msra.mxu0 %v1698
        %1722 = vmatprep.subr.mxu0 0.0
        %1723 = vmatpush1.msra.mxu0 %v1697
        %1724 = vmatprep.subr.mxu0 0.0
        %1725 = vmatpush1.msra.mxu0 %v1696
        %1726 = vmatprep.subr.mxu0 0.0
        %1727 = vmatpush1.msra.mxu0 %v1695
        %1728 = vmatprep.subr.mxu0 0.0
        %1729 = vmatpush1.msra.mxu0 %v1694
        %1730 = vmatprep.subr.mxu0 0.0
        %1731 = vmatpush1.msra.mxu0 %v1693
        %1732 = vmatprep.subr.mxu0 0.0
        %1733 = vmatpush1.msra.mxu0 %v1692
        %1734 = vmatprep.subr.mxu0 0.0
        %1735 = vmatpush1.msra.mxu0 %v1691
        %1736 = vmatprep.subr.mxu0 0.0
        %1737 = vmatpush1.msra.mxu0 %v1690
        %1738 = vmatprep.subr.mxu0 0.0
        %1739 = vmatpush2.msra.mxu0 0.0
        %1740 = vmatprep.subr.mxu0 0.0
        %1741 = vmatpush2.msra.mxu0 0.0
        %1742 = vmatprep.subr.mxu0 0.0
        %1743 = vmatpush2.msra.mxu0 0.0
        %1744 = vmatprep.subr.mxu0 0.0
        %1745 = vmatpush2.msra.mxu0 0.0
        %1746 = vmatprep.subr.mxu0 0.0
        %1747 = vmatpush2.msra.mxu0 0.0
        %1748 = vmatprep.subr.mxu0 0.0
        %1749 = vmatpush2.msra.mxu0 0.0
        %1750 = vmatprep.subr.mxu0 0.0
        %1751 = vmatpush2.msra.mxu0 0.0
        %1752 = vmatprep.subr.mxu0 0.0
        %1753 = vmatpush2.msra.mxu0 0.0
        %1754 = vmatprep.subr.mxu0 0.0
        %1755 = vmatpush2.msra.mxu0 0.0
        %1756 = vmatprep.subr.mxu0 0.0
        %1757 = vmatpush2.msra.mxu0 0.0
        %1758 = vmatprep.subr.mxu0 0.0
        %1759 = vmatpush2.msra.mxu0 0.0
        %1760 = vmatprep.subr.mxu0 0.0
        %1761 = vmatpush2.msra.mxu0 0.0
        %1762 = vmatprep.subr.mxu0 0.0
        %1763 = vmatpush2.msra.mxu0 0.0
        %1764 = vmatprep.subr.mxu0 0.0
        %1765 = vmatpush2.msra.mxu0 0.0
        %1766 = vmatprep.subr.mxu0 0.0
        %1767 = vmatpush2.msra.mxu0 0.0
        %1768 = vmatprep.subr.mxu0 0.0
        %1769 = vmatpush2.msra.mxu0 0.0
        %1770 = vmatprep.mubr.f32.mxu0 0.0
        %1771 = vmatmul.mubr.f32.gmra.mxu0 %v1688
        %v1772 = vpop.f32.mrf.mxu0
        %v1773 = vadd.f32 0.0, %v1772
        %v1774 = vpop.f32.mrf.mxu0
        %1775 = vdwg.mxu0
        %v1776 = vadd.f32 %v1687, %v1773
        %v1777 = vld [vmem:[#allocation2 + $0xe] sm:$0x1]
        %s1778 = scalar_lea.vmem [#allocation3], 1792
        %v1779 = vld [vmem:[%s1778] sm:$0xff]
        %v1780 = vld [vmem:[%s1778 + $0x8] sm:$0xff]
        %v1781 = vld [vmem:[%s1778 + $0x10] sm:$0xff]
        %v1782 = vld [vmem:[%s1778 + $0x18] sm:$0xff]
        %v1783 = vld [vmem:[%s1778 + $0x20] sm:$0xff]
        %v1784 = vld [vmem:[%s1778 + $0x28] sm:$0xff]
        %v1785 = vld [vmem:[%s1778 + $0x30] sm:$0xff]
        %v1786 = vld [vmem:[%s1778 + $0x38] sm:$0xff]
        %v1787 = vld [vmem:[%s1778 + $0x40] sm:$0xff]
        %v1788 = vld [vmem:[%s1778 + $0x48] sm:$0xff]
        %v1789 = vld [vmem:[%s1778 + $0x50] sm:$0xff]
        %v1790 = vld [vmem:[%s1778 + $0x58] sm:$0xff]
        %v1791 = vld [vmem:[%s1778 + $0x60] sm:$0xff]
        %v1792 = vld [vmem:[%s1778 + $0x68] sm:$0xff]
        %v1793 = vld [vmem:[%s1778 + $0x70] sm:$0xff]
        %v1794 = vld [vmem:[%s1778 + $0x78] sm:$0xff]
        %1795 = vmatprep.subr.mxu0 0.0
        %1796 = vmatpush1.msra.mxu0 %v1794
        %1797 = vmatprep.subr.mxu0 0.0
        %1798 = vmatpush1.msra.mxu0 %v1793
        %1799 = vmatprep.subr.mxu0 0.0
        %1800 = vmatpush1.msra.mxu0 %v1792
        %1801 = vmatprep.subr.mxu0 0.0
        %1802 = vmatpush1.msra.mxu0 %v1791
        %1803 = vmatprep.subr.mxu0 0.0
        %1804 = vmatpush1.msra.mxu0 %v1790
        %1805 = vmatprep.subr.mxu0 0.0
        %1806 = vmatpush1.msra.mxu0 %v1789
        %1807 = vmatprep.subr.mxu0 0.0
        %1808 = vmatpush1.msra.mxu0 %v1788
        %1809 = vmatprep.subr.mxu0 0.0
        %1810 = vmatpush1.msra.mxu0 %v1787
        %1811 = vmatprep.subr.mxu0 0.0
        %1812 = vmatpush1.msra.mxu0 %v1786
        %1813 = vmatprep.subr.mxu0 0.0
        %1814 = vmatpush1.msra.mxu0 %v1785
        %1815 = vmatprep.subr.mxu0 0.0
        %1816 = vmatpush1.msra.mxu0 %v1784
        %1817 = vmatprep.subr.mxu0 0.0
        %1818 = vmatpush1.msra.mxu0 %v1783
        %1819 = vmatprep.subr.mxu0 0.0
        %1820 = vmatpush1.msra.mxu0 %v1782
        %1821 = vmatprep.subr.mxu0 0.0
        %1822 = vmatpush1.msra.mxu0 %v1781
        %1823 = vmatprep.subr.mxu0 0.0
        %1824 = vmatpush1.msra.mxu0 %v1780
        %1825 = vmatprep.subr.mxu0 0.0
        %1826 = vmatpush1.msra.mxu0 %v1779
        %1827 = vmatprep.subr.mxu0 0.0
        %1828 = vmatpush2.msra.mxu0 0.0
        %1829 = vmatprep.subr.mxu0 0.0
        %1830 = vmatpush2.msra.mxu0 0.0
        %1831 = vmatprep.subr.mxu0 0.0
        %1832 = vmatpush2.msra.mxu0 0.0
        %1833 = vmatprep.subr.mxu0 0.0
        %1834 = vmatpush2.msra.mxu0 0.0
        %1835 = vmatprep.subr.mxu0 0.0
        %1836 = vmatpush2.msra.mxu0 0.0
        %1837 = vmatprep.subr.mxu0 0.0
        %1838 = vmatpush2.msra.mxu0 0.0
        %1839 = vmatprep.subr.mxu0 0.0
        %1840 = vmatpush2.msra.mxu0 0.0
        %1841 = vmatprep.subr.mxu0 0.0
        %1842 = vmatpush2.msra.mxu0 0.0
        %1843 = vmatprep.subr.mxu0 0.0
        %1844 = vmatpush2.msra.mxu0 0.0
        %1845 = vmatprep.subr.mxu0 0.0
        %1846 = vmatpush2.msra.mxu0 0.0
        %1847 = vmatprep.subr.mxu0 0.0
        %1848 = vmatpush2.msra.mxu0 0.0
        %1849 = vmatprep.subr.mxu0 0.0
        %1850 = vmatpush2.msra.mxu0 0.0
        %1851 = vmatprep.subr.mxu0 0.0
        %1852 = vmatpush2.msra.mxu0 0.0
        %1853 = vmatprep.subr.mxu0 0.0
        %1854 = vmatpush2.msra.mxu0 0.0
        %1855 = vmatprep.subr.mxu0 0.0
        %1856 = vmatpush2.msra.mxu0 0.0
        %1857 = vmatprep.subr.mxu0 0.0
        %1858 = vmatpush2.msra.mxu0 0.0
        %1859 = vmatprep.mubr.f32.mxu0 0.0
        %1860 = vmatmul.mubr.f32.gmra.mxu0 %v1777
        %v1861 = vpop.f32.mrf.mxu0
        %v1862 = vadd.f32 0.0, %v1861
        %v1863 = vpop.f32.mrf.mxu0
        %1864 = vdwg.mxu0
        %v1865 = vadd.f32 %v1776, %v1862
        %v1866 = vld [vmem:[#allocation2 + $0xf] sm:$0x1]
        %s1867 = scalar_lea.vmem [#allocation3], 1920
        %v1868 = vld [vmem:[%s1867] sm:$0xff]
        %v1869 = vld [vmem:[%s1867 + $0x8] sm:$0xff]
        %v1870 = vld [vmem:[%s1867 + $0x10] sm:$0xff]
        %v1871 = vld [vmem:[%s1867 + $0x18] sm:$0xff]
        %v1872 = vld [vmem:[%s1867 + $0x20] sm:$0xff]
        %v1873 = vld [vmem:[%s1867 + $0x28] sm:$0xff]
        %v1874 = vld [vmem:[%s1867 + $0x30] sm:$0xff]
        %v1875 = vld [vmem:[%s1867 + $0x38] sm:$0xff]
        %v1876 = vld [vmem:[%s1867 + $0x40] sm:$0xff]
        %v1877 = vld [vmem:[%s1867 + $0x48] sm:$0xff]
        %v1878 = vld [vmem:[%s1867 + $0x50] sm:$0xff]
        %v1879 = vld [vmem:[%s1867 + $0x58] sm:$0xff]
        %v1880 = vld [vmem:[%s1867 + $0x60] sm:$0xff]
        %v1881 = vld [vmem:[%s1867 + $0x68] sm:$0xff]
        %v1882 = vld [vmem:[%s1867 + $0x70] sm:$0xff]
        %v1883 = vld [vmem:[%s1867 + $0x78] sm:$0xff]
        %1884 = vmatprep.subr.mxu0 0.0
        %1885 = vmatpush1.msra.mxu0 %v1883
        %1886 = vmatprep.subr.mxu0 0.0
        %1887 = vmatpush1.msra.mxu0 %v1882
        %1888 = vmatprep.subr.mxu0 0.0
        %1889 = vmatpush1.msra.mxu0 %v1881
        %1890 = vmatprep.subr.mxu0 0.0
        %1891 = vmatpush1.msra.mxu0 %v1880
        %1892 = vmatprep.subr.mxu0 0.0
        %1893 = vmatpush1.msra.mxu0 %v1879
        %1894 = vmatprep.subr.mxu0 0.0
        %1895 = vmatpush1.msra.mxu0 %v1878
        %1896 = vmatprep.subr.mxu0 0.0
        %1897 = vmatpush1.msra.mxu0 %v1877
        %1898 = vmatprep.subr.mxu0 0.0
        %1899 = vmatpush1.msra.mxu0 %v1876
        %1900 = vmatprep.subr.mxu0 0.0
        %1901 = vmatpush1.msra.mxu0 %v1875
        %1902 = vmatprep.subr.mxu0 0.0
        %1903 = vmatpush1.msra.mxu0 %v1874
        %1904 = vmatprep.subr.mxu0 0.0
        %1905 = vmatpush1.msra.mxu0 %v1873
        %1906 = vmatprep.subr.mxu0 0.0
        %1907 = vmatpush1.msra.mxu0 %v1872
        %1908 = vmatprep.subr.mxu0 0.0
        %1909 = vmatpush1.msra.mxu0 %v1871
        %1910 = vmatprep.subr.mxu0 0.0
        %1911 = vmatpush1.msra.mxu0 %v1870
        %1912 = vmatprep.subr.mxu0 0.0
        %1913 = vmatpush1.msra.mxu0 %v1869
        %1914 = vmatprep.subr.mxu0 0.0
        %1915 = vmatpush1.msra.mxu0 %v1868
        %1916 = vmatprep.subr.mxu0 0.0
        %1917 = vmatpush2.msra.mxu0 0.0
        %1918 = vmatprep.subr.mxu0 0.0
        %1919 = vmatpush2.msra.mxu0 0.0
        %1920 = vmatprep.subr.mxu0 0.0
        %1921 = vmatpush2.msra.mxu0 0.0
        %1922 = vmatprep.subr.mxu0 0.0
        %1923 = vmatpush2.msra.mxu0 0.0
        %1924 = vmatprep.subr.mxu0 0.0
        %1925 = vmatpush2.msra.mxu0 0.0
        %1926 = vmatprep.subr.mxu0 0.0
        %1927 = vmatpush2.msra.mxu0 0.0
        %1928 = vmatprep.subr.mxu0 0.0
        %1929 = vmatpush2.msra.mxu0 0.0
        %1930 = vmatprep.subr.mxu0 0.0
        %1931 = vmatpush2.msra.mxu0 0.0
        %1932 = vmatprep.subr.mxu0 0.0
        %1933 = vmatpush2.msra.mxu0 0.0
        %1934 = vmatprep.subr.mxu0 0.0
        %1935 = vmatpush2.msra.mxu0 0.0
        %1936 = vmatprep.subr.mxu0 0.0
        %1937 = vmatpush2.msra.mxu0 0.0
        %1938 = vmatprep.subr.mxu0 0.0
        %1939 = vmatpush2.msra.mxu0 0.0
        %1940 = vmatprep.subr.mxu0 0.0
        %1941 = vmatpush2.msra.mxu0 0.0
        %1942 = vmatprep.subr.mxu0 0.0
        %1943 = vmatpush2.msra.mxu0 0.0
        %1944 = vmatprep.subr.mxu0 0.0
        %1945 = vmatpush2.msra.mxu0 0.0
        %1946 = vmatprep.subr.mxu0 0.0
        %1947 = vmatpush2.msra.mxu0 0.0
        %1948 = vmatprep.mubr.f32.mxu0 0.0
        %1949 = vmatmul.mubr.f32.gmra.mxu0 %v1866
        %v1950 = vpop.f32.mrf.mxu0
        %v1951 = vadd.f32 0.0, %v1950
        %v1952 = vpop.f32.mrf.mxu0
        %1953 = vdwg.mxu0
        %v1954 = vadd.f32 %v1865, %v1951
        %1955 = vst [vmem:[%s231] sm:$0x1] %v1954
        %s1956 = sand.u32 %s138, 1
        %s1957 = scalar_lea.sflag [#allocation5], %s1956
        %s1958 = sand.u32 %s138, 1
        %s1959 = scalar_lea.vmem [#allocation6], %s1958
        // Predicated region
        $region45: #{_fused_forward.1} parent=39 // pred_check
          %p1960 = pneg %p148
        $region46: #{_fused_forward.1} parent=39 // pred_check_branch
          %1962 = sbr.rel (%p1960) target = $region48
        $region47: #{_fused_forward.1} parent=39 // pred_region
          %s1964 = ssub.s32 16, 16
          %1965 = vsyncadd %s1957, %s1964
          %s1966 = smul.addr %s20, 16
          %s1967 = scalar_lea.hbm %s5, %s1966
          %s1969 = sshll.u32 %s1959, 4
          %s1970 = int_to_ptr.vmem [resolvable:$true] %s1969
          %1972 = dma.vmem_to_hbm [thread:$0]  %s1970, 16, %s1967, %s1957
        $region48: #{_fused_forward.1} parent=39 // pred_fallthru
          _
      $region40: #{_fused_forward.1} parent=5 // pred_fallthru
        _
      %p1973 = scmp.le.s32.totalorder 2, %s15
      // Predicated region
      $region49: #{_fused_forward.1} parent=5 // pred_check
        %p1974 = pneg %p1973
      $region50: #{_fused_forward.1} parent=5 // pred_check_branch
        %1976 = sbr.rel (%p1974) target = $region52
      $region51: #{_fused_forward.1} parent=5 // pred_region
        %s1977 = ssub.s32 %s15, 2
        // Predicated region
        $region53: #{_fused_forward.1} parent=51 // pred_check
          %p1978 = pneg %p154
        $region54: #{_fused_forward.1} parent=51 // pred_check_branch
          %1980 = sbr.rel (%p1978) target = $region56
        $region55: #{_fused_forward.1} parent=51 // pred_region
          %s1981 = sand.u32 %s139, 1
          %s1982 = scalar_lea.sflag [#allocation5], %s1981
          %s1983 = sand.u32 %s139, 1
          %s1984 = scalar_lea.vmem [#allocation6], %s1983
          %1985 = dma.done %s1982, 16
        $region56: #{_fused_forward.1} parent=51 // pred_fallthru
          _
      $region52: #{_fused_forward.1} parent=5 // pred_fallthru
        _
    $region6: #{_fused_forward.1} parent=1 // loop_footer
      %s19 = sadd.s32 1, %s15
    $region7: #{_fused_forward.1} parent=1 // loop_footer_branch
      %14 = sbr.rel target = $region3
    $region8: #{_fused_forward.1} parent=1 // loop_exit
      _
    %1986 = vsyncpa [#allocation4], 1
    %s1987 = scalar_lea.sflag [#allocation4], 1
    %1988 = vsyncpa %s1987, 1
    %1989 = vsyncpa [#allocation5], 1
    %s1990 = scalar_lea.sflag [#allocation5], 1
    %1991 = vsyncpa %s1990, 1

</llo_original>
